<compile_context>
chip_gen: v7x
topology: tpu7x:2x2x1
jax: 0.10.0
libtpu: 0.0.40
codegen_flags: <defaults>
</compile_context>

<pallas_src>
import functools

import numpy as np
import jax
import jax.numpy as jnp
from jax import lax
from jax.experimental import pallas as pl
from jax.experimental.pallas import tpu as pltpu


_TRANS_B = (((1,), (1,)), ((), ()))   # contract last dim of LHS with last dim of RHS


# ------------------------------- helpers ------------------------------------- #
def _round_up(n, m):
    return ((n + m - 1) // m) * m


def _pick_tile(n, unit, max_tile=256):
    """Return (tile, padded_n). Tile is a multiple of `unit`; single-tile if small."""
    n_unit = _round_up(n, unit)
    if n_unit <= max_tile:
        return n_unit, n_unit                 # one tile covers everything
    best_t, best_pad = None, None
    for t in (max_tile, 128):                 # MXU / lane friendly tile sizes
        pad = _round_up(n, t)
        if best_pad is None or pad < best_pad:
            best_t, best_pad = t, pad
    return best_t, best_pad


def _build_selectors(D, Dp, divided_nums, nc_pad):
    """Constant selector / expansion matrices describing the chunk structure.

    S  : (Dp, NCp)     S[k, j] = 1 if original column k belongs to chunk j
    Ex : (NCp, NS*Dp)  x-side expansion; chunk j's weight 1/(d_j * NS) on its columns
    Ey : (NCp, NS*Dp)  y-side expansion; plain 0/1
    Padded rows/columns are zero so they contribute exactly nothing.
    """
    NS = len(divided_nums)
    chunks = []
    for s, d in enumerate(divided_nums):
        c = D // d
        for i in range(d):
            chunks.append((i * c, (i + 1) * c, s, 1.0 / (d * NS)))
    S = np.zeros((Dp, nc_pad), np.float32)
    Ex = np.zeros((nc_pad, NS * Dp), np.float32)
    Ey = np.zeros((nc_pad, NS * Dp), np.float32)
    for j, (a, b, s, w) in enumerate(chunks):
        S[a:b, j] = 1.0
        Ex[j, s * Dp + a:s * Dp + b] = w
        Ey[j, s * Dp + a:s * Dp + b] = 1.0
    return jnp.asarray(S), jnp.asarray(Ex), jnp.asarray(Ey)


# ----------------------------- Pallas kernel --------------------------------- #
def _gls_kernel(x_ref, y_ref, s_ref, ex_ref, ey_ref, o_ref, xcat_ref, *, ns, dp, eps):
    # x_ref: (BX, Dp) bf16, y_ref: (BY, Dp) bf16, s_ref: (Dp, NCp) f32,
    # ex_ref/ey_ref: (NCp, NS*Dp) f32, o_ref: (BX, BY) f32,
    # xcat_ref: (BX, NS*Dp) bf16 VMEM scratch (persists across grid steps).
    eps_sq = eps * eps                         # max(sqrt(ss), eps) == sqrt(max(ss, eps^2))

    # ---- x-side preprocessing: only when the fast (j) axis wraps to 0 --------- #
    @pl.when(pl.program_id(1) == 0)
    def _():
        xt = jnp.tanh(x_ref[...].astype(jnp.float32))                  # (BX, Dp) f32
        ss = jnp.dot(xt * xt, s_ref[...],
                     preferred_element_type=jnp.float32)               # (BX, NCp)
        inv = lax.rsqrt(jnp.maximum(ss, eps_sq))                       # (BX, NCp)
        scale = jnp.dot(inv, ex_ref[...],
                        preferred_element_type=jnp.float32)            # (BX, NS*Dp)
        for s in range(ns):                                            # static, unrolled
            xcat_ref[:, s * dp:(s + 1) * dp] = (
                xt * scale[:, s * dp:(s + 1) * dp]).astype(jnp.bfloat16)

    # ---- y-side preprocessing (every grid step) -------------------------------- #
    yt = jnp.tanh(y_ref[...].astype(jnp.float32))                      # (BY, Dp) f32
    ss_y = jnp.dot(yt * yt, s_ref[...], preferred_element_type=jnp.float32)
    inv_y = lax.rsqrt(jnp.maximum(ss_y, eps_sq))
    scale_y = jnp.dot(inv_y, ey_ref[...], preferred_element_type=jnp.float32)
    ycat = jnp.concatenate(
        [(yt * scale_y[:, s * dp:(s + 1) * dp]).astype(jnp.bfloat16)
         for s in range(ns)], axis=-1)                                 # (BY, NS*Dp) bf16

    # ---- single K = NS*Dp bf16 MXU contraction, f32 accumulation --------------- #
    o_ref[...] = lax.dot_general(
        xcat_ref[...], ycat, dimension_numbers=_TRANS_B,
        preferred_element_type=jnp.float32)


# -------------------------------- wrapper ------------------------------------- #
def global_local_similarity(x, y, divided_nums=(1, 3, 5), *,
                            input_dtype=jnp.bfloat16, eps=1e-12):
    """x: (Bx, D), y: (By, D) -> (Bx, By); D must be divisible by every divided_num."""
    Bx, D = x.shape
    By, Dy = y.shape
    assert D == Dy, (D, Dy)
    for d in divided_nums:
        assert D % d == 0, f"feature dim {D} not divisible by {d}"

    NS = len(divided_nums)
    Dp = _round_up(D, 128)                       # lane-aligned feature width
    NCp = _round_up(sum(divided_nums), 128)      # lane-aligned chunk count
    S, Ex, Ey = _build_selectors(D, Dp, divided_nums, NCp)

    bx_tile, bx_pad = _pick_tile(Bx, 8, 256)     # sublane-dense x rows
    by_tile, by_pad = _pick_tile(By, 128, 256)   # lane-dense output columns

    xp = jnp.zeros((bx_pad, Dp), input_dtype).at[:Bx, :D].set(x.astype(input_dtype))
    yp = jnp.zeros((by_pad, Dp), input_dtype).at[:By, :D].set(y.astype(input_dtype))

    grid = (bx_pad // bx_tile, by_pad // by_tile)

    kernel = functools.partial(_gls_kernel, ns=NS, dp=Dp, eps=float(eps))

    out = pl.pallas_call(
        kernel,
        out_shape=jax.ShapeDtypeStruct((bx_pad, by_pad), jnp.float32),
        grid_spec=pltpu.PrefetchScalarGridSpec(
            num_scalar_prefetch=0,
            grid=grid,
            in_specs=[
                pl.BlockSpec((bx_tile, Dp), lambda i, j: (i, 0)),    # x tile (j-invariant)
                pl.BlockSpec((by_tile, Dp), lambda i, j: (j, 0)),    # y tile
                pl.BlockSpec((Dp, NCp), lambda i, j: (0, 0)),        # chunk selector
                pl.BlockSpec((NCp, NS * Dp), lambda i, j: (0, 0)),   # x expansion (+weights)
                pl.BlockSpec((NCp, NS * Dp), lambda i, j: (0, 0)),   # y expansion
            ],
            out_specs=pl.BlockSpec((bx_tile, by_tile), lambda i, j: (i, j)),
            scratch_shapes=[pltpu.VMEM((bx_tile, NS * Dp), jnp.bfloat16)],
        ),
        compiler_params=pltpu.CompilerParams(
            dimension_semantics=("parallel", "arbitrary")),
    )(xp, yp, S, Ex, Ey)

    return out[:Bx, :By]


# --------------------------- pure-JAX reference -------------------------------- #
def _reference(x, y, divided_nums=(1, 3, 5), eps=1e-12):
    xt, yt = jnp.tanh(x), jnp.tanh(y)
    scale_sims = []
    for d in divided_nums:
        xr = xt.reshape(x.shape[0], d, -1)
        yr = yt.reshape(y.shape[0], d, -1)
        per_chunk = []
        for i in range(d):
            xi, yi = xr[:, i, :], yr[:, i, :]
            xi = xi / jnp.maximum(jnp.linalg.norm(xi, axis=1, keepdims=True), eps)
            yi = yi / jnp.maximum(jnp.linalg.norm(yi, axis=1, keepdims=True), eps)
            per_chunk.append(xi @ yi.T)
        scale_sims.append(jnp.mean(jnp.stack(per_chunk, axis=-1), axis=-1))
    return jnp.mean(jnp.stack(scale_sims, axis=-1), axis=-1)


# ---------------------------------- main ---------------------------------------- #
if __name__ == "__main__":
    key = jax.random.PRNGKey(0)
    kx, ky = jax.random.split(key)

    # Small shapes consistent with the module: two embedding sets of dim D with D
    # divisible by every divided_num (1, 3, 5). Bx/By intentionally unaligned to
    # exercise the padding path; D=240 exercises the 240->256 lane padding.
    Bx, By, D = 6, 10, 240
    x = jax.random.normal(kx, (Bx, D), dtype=jnp.float32)
    y = jax.random.normal(ky, (By, D), dtype=jnp.float32)

    out = global_local_similarity(x, y, divided_nums=(1, 3, 5))
    out = jax.block_until_ready(out)

    ref = _reference(x, y, divided_nums=(1, 3, 5))

    assert out.shape == (Bx, By), out.shape
    assert bool(jnp.all(jnp.isfinite(out)))
    max_err = float(jnp.max(jnp.abs(out - ref)))
    assert bool(jnp.allclose(out, ref, atol=1e-2, rtol=1e-2)), max_err
    print("KERNEL_OK")
</pallas_src>

<mosaic_0001>
module attributes {stable_mosaic.version = 11 : i64} {
  func.func @_gls_kernel(%arg0: i32, %arg1: i32, %arg2: memref<8x256xbf16, #tpu.memory_space<vmem>>, %arg3: memref<128x256xbf16, #tpu.memory_space<vmem>>, %arg4: memref<256x128xf32, #tpu.memory_space<vmem>>, %arg5: memref<128x768xf32, #tpu.memory_space<vmem>>, %arg6: memref<128x768xf32, #tpu.memory_space<vmem>>, %arg7: memref<8x128xf32, #tpu.memory_space<vmem>>, %arg8: memref<8x768xbf16, #tpu.memory_space<vmem>>) attributes {dimension_semantics = [#tpu.dimension_semantics<parallel>, #tpu.dimension_semantics<arbitrary>], iteration_bounds = array<i64: 1, 1>, scalar_prefetch = 0 : i64, scratch_operands = 1 : i64, tpu.core_type = #tpu.core_type<tc>, window_params = [{transform_indices = @transform_0, window_bounds = array<i64: 8, 256>}, {transform_indices = @transform_1, window_bounds = array<i64: 128, 256>}, {pipeline_mode = #tpu.pipeline_mode<synchronous>, transform_indices = @transform_2, window_bounds = array<i64: 256, 128>}, {pipeline_mode = #tpu.pipeline_mode<synchronous>, transform_indices = @transform_3, window_bounds = array<i64: 128, 768>}, {pipeline_mode = #tpu.pipeline_mode<synchronous>, transform_indices = @transform_4, window_bounds = array<i64: 128, 768>}, {transform_indices = @transform_5, window_bounds = array<i64: 8, 128>}]} {
    %c0_i32 = arith.constant 0 : i32
    %0 = arith.cmpi eq, %arg1, %c0_i32 : i32
    %1 = arith.extui %0 : i1 to i32
    %c0_i32_0 = arith.constant 0 : i32
    %2 = arith.cmpi ne, %1, %c0_i32_0 : i32
    scf.if %2 {
      %c0_13 = arith.constant 0 : index
      %c0_14 = arith.constant 0 : index
      %27 = vector.load %arg2[%c0_13, %c0_14] : memref<8x256xbf16, #tpu.memory_space<vmem>>, vector<8x256xbf16>
      %28 = arith.extf %27 : vector<8x256xbf16> to vector<8x256xf32>
      %29 = math.tanh %28 : vector<8x256xf32>
      %30 = arith.mulf %29, %29 : vector<8x256xf32>
      %c0_15 = arith.constant 0 : index
      %c0_16 = arith.constant 0 : index
      %31 = vector.load %arg4[%c0_15, %c0_16] : memref<256x128xf32, #tpu.memory_space<vmem>>, vector<256x128xf32>
      %cst_17 = arith.constant dense<0.000000e+00> : vector<8x128xf32>
      %32 = tpu.matmul %30, %31, %cst_17 {dimension_numbers = #tpu.dot_dimension_numbers<[1], [0], [0], [1], [0, 0, 1, 1], [], []>} : vector<8x256xf32>, vector<256x128xf32>, vector<8x128xf32> -> vector<8x128xf32>
      %cst_18 = arith.constant 1.000000e-24 : f32
      %33 = vector.broadcast %cst_18 : f32 to vector<8x128xf32>
      %34 = arith.maximumf %32, %33 : vector<8x128xf32>
      %35 = math.rsqrt %34 : vector<8x128xf32>
      %c0_19 = arith.constant 0 : index
      %c0_20 = arith.constant 0 : index
      %36 = vector.load %arg5[%c0_19, %c0_20] : memref<128x768xf32, #tpu.memory_space<vmem>>, vector<128x768xf32>
      %cst_21 = arith.constant dense<0.000000e+00> : vector<8x768xf32>
      %37 = tpu.matmul %35, %36, %cst_21 {dimension_numbers = #tpu.dot_dimension_numbers<[1], [0], [0], [1], [0, 0, 1, 1], [], []>} : vector<8x128xf32>, vector<128x768xf32>, vector<8x768xf32> -> vector<8x768xf32>
      %38 = vector.extract_strided_slice %37 {offsets = [0, 0], sizes = [8, 256], strides = [1, 1]} : vector<8x768xf32> to vector<8x256xf32>
      %39 = arith.mulf %29, %38 : vector<8x256xf32>
      %40 = arith.truncf %39 : vector<8x256xf32> to vector<8x256xbf16>
      %c0_22 = arith.constant 0 : index
      %c0_23 = arith.constant 0 : index
      %41 = vector.load %arg8[%c0_22, %c0_23] : memref<8x768xbf16, #tpu.memory_space<vmem>>, vector<8x256xbf16>
      tpu.vector_store %arg8[%c0_22, %c0_23], %40 {strides = array<i32>} : memref<8x768xbf16, #tpu.memory_space<vmem>>, vector<8x256xbf16>,
      %42 = vector.extract_strided_slice %37 {offsets = [0, 256], sizes = [8, 256], strides = [1, 1]} : vector<8x768xf32> to vector<8x256xf32>
      %43 = arith.mulf %29, %42 : vector<8x256xf32>
      %44 = arith.truncf %43 : vector<8x256xf32> to vector<8x256xbf16>
      %c0_24 = arith.constant 0 : index
      %c256 = arith.constant 256 : index
      %45 = vector.load %arg8[%c0_24, %c256] : memref<8x768xbf16, #tpu.memory_space<vmem>>, vector<8x256xbf16>
      tpu.vector_store %arg8[%c0_24, %c256], %44 {strides = array<i32>} : memref<8x768xbf16, #tpu.memory_space<vmem>>, vector<8x256xbf16>,
      %46 = vector.extract_strided_slice %37 {offsets = [0, 512], sizes = [8, 256], strides = [1, 1]} : vector<8x768xf32> to vector<8x256xf32>
      %47 = arith.mulf %29, %46 : vector<8x256xf32>
      %48 = arith.truncf %47 : vector<8x256xf32> to vector<8x256xbf16>
      %c0_25 = arith.constant 0 : index
      %c512 = arith.constant 512 : index
      %49 = vector.load %arg8[%c0_25, %c512] : memref<8x768xbf16, #tpu.memory_space<vmem>>, vector<8x256xbf16>
      tpu.vector_store %arg8[%c0_25, %c512], %48 {strides = array<i32>} : memref<8x768xbf16, #tpu.memory_space<vmem>>, vector<8x256xbf16>,
    } else {
    }
    %c0 = arith.constant 0 : index
    %c0_1 = arith.constant 0 : index
    %3 = vector.load %arg3[%c0, %c0_1] : memref<128x256xbf16, #tpu.memory_space<vmem>>, vector<128x256xbf16>
    %4 = arith.extf %3 : vector<128x256xbf16> to vector<128x256xf32>
    %5 = math.tanh %4 : vector<128x256xf32>
    %6 = arith.mulf %5, %5 : vector<128x256xf32>
    %c0_2 = arith.constant 0 : index
    %c0_3 = arith.constant 0 : index
    %7 = vector.load %arg4[%c0_2, %c0_3] : memref<256x128xf32, #tpu.memory_space<vmem>>, vector<256x128xf32>
    %cst = arith.constant dense<0.000000e+00> : vector<128x128xf32>
    %8 = tpu.matmul %6, %7, %cst {dimension_numbers = #tpu.dot_dimension_numbers<[1], [0], [0], [1], [0, 0, 1, 1], [], []>} : vector<128x256xf32>, vector<256x128xf32>, vector<128x128xf32> -> vector<128x128xf32>
    %cst_4 = arith.constant 1.000000e-24 : f32
    %9 = vector.broadcast %cst_4 : f32 to vector<128x128xf32>
    %10 = arith.maximumf %8, %9 : vector<128x128xf32>
    %11 = math.rsqrt %10 : vector<128x128xf32>
    %c0_5 = arith.constant 0 : index
    %c0_6 = arith.constant 0 : index
    %12 = vector.load %arg6[%c0_5, %c0_6] : memref<128x768xf32, #tpu.memory_space<vmem>>, vector<128x768xf32>
    %cst_7 = arith.constant dense<0.000000e+00> : vector<128x768xf32>
    %13 = tpu.matmul %11, %12, %cst_7 {dimension_numbers = #tpu.dot_dimension_numbers<[1], [0], [0], [1], [0, 0, 1, 1], [], []>} : vector<128x128xf32>, vector<128x768xf32>, vector<128x768xf32> -> vector<128x768xf32>
    %14 = vector.extract_strided_slice %13 {offsets = [0, 0], sizes = [128, 256], strides = [1, 1]} : vector<128x768xf32> to vector<128x256xf32>
    %15 = arith.mulf %5, %14 : vector<128x256xf32>
    %16 = arith.truncf %15 : vector<128x256xf32> to vector<128x256xbf16>
    %17 = vector.extract_strided_slice %13 {offsets = [0, 256], sizes = [128, 256], strides = [1, 1]} : vector<128x768xf32> to vector<128x256xf32>
    %18 = arith.mulf %5, %17 : vector<128x256xf32>
    %19 = arith.truncf %18 : vector<128x256xf32> to vector<128x256xbf16>
    %20 = vector.extract_strided_slice %13 {offsets = [0, 512], sizes = [128, 256], strides = [1, 1]} : vector<128x768xf32> to vector<128x256xf32>
    %21 = arith.mulf %5, %20 : vector<128x256xf32>
    %22 = arith.truncf %21 : vector<128x256xf32> to vector<128x256xbf16>
    %23 = tpu.concatenate %16, %19, %22 in 1 : vector<128x256xbf16>, vector<128x256xbf16>, vector<128x256xbf16> -> vector<128x768xbf16>
    %c0_8 = arith.constant 0 : index
    %c0_9 = arith.constant 0 : index
    %24 = vector.load %arg8[%c0_8, %c0_9] : memref<8x768xbf16, #tpu.memory_space<vmem>>, vector<8x768xbf16>
    %cst_10 = arith.constant dense<0.000000e+00> : vector<8x128xf32>
    %25 = tpu.matmul %24, %23, %cst_10 {dimension_numbers = #tpu.dot_dimension_numbers<[1], [1], [0], [0], [0, 0, 1, 0], [], []>} : vector<8x768xbf16>, vector<128x768xbf16>, vector<8x128xf32> -> vector<8x128xf32>
    %c0_11 = arith.constant 0 : index
    %c0_12 = arith.constant 0 : index
    %26 = vector.load %arg7[%c0_11, %c0_12] : memref<8x128xf32, #tpu.memory_space<vmem>>, vector<8x128xf32>
    tpu.vector_store %arg7[%c0_11, %c0_12], %25 {strides = array<i32>} : memref<8x128xf32, #tpu.memory_space<vmem>>, vector<8x128xf32>,
    return
  }
  func.func @transform_0(%arg0: i32, %arg1: i32) -> (i32, i32) {
    %c0_i32 = arith.constant 0 : i32
    %c0_i32_0 = arith.constant 0 : i32
    return %arg0, %c0_i32 : i32, i32
  }
  func.func @transform_1(%arg0: i32, %arg1: i32) -> (i32, i32) {
    %c0_i32 = arith.constant 0 : i32
    %c0_i32_0 = arith.constant 0 : i32
    return %arg1, %c0_i32 : i32, i32
  }
  func.func @transform_2(%arg0: i32, %arg1: i32) -> (i32, i32) {
    %c0_i32 = arith.constant 0 : i32
    %c0_i32_0 = arith.constant 0 : i32
    %c0_i32_1 = arith.constant 0 : i32
    return %c0_i32, %c0_i32_0 : i32, i32
  }
  func.func @transform_3(%arg0: i32, %arg1: i32) -> (i32, i32) {
    %c0_i32 = arith.constant 0 : i32
    %c0_i32_0 = arith.constant 0 : i32
    %c0_i32_1 = arith.constant 0 : i32
    return %c0_i32, %c0_i32_0 : i32, i32
  }
  func.func @transform_4(%arg0: i32, %arg1: i32) -> (i32, i32) {
    %c0_i32 = arith.constant 0 : i32
    %c0_i32_0 = arith.constant 0 : i32
    %c0_i32_1 = arith.constant 0 : i32
    return %c0_i32, %c0_i32_0 : i32, i32
  }
  func.func @transform_5(%arg0: i32, %arg1: i32) -> (i32, i32) {
    %c0_i32 = arith.constant 0 : i32
    return %arg0, %arg1 : i32, i32
  }
}

</mosaic_0001>

<llo_original>
// kernel: tpu_custom_call.1
$region0: #{tpu_custom_call.1}
  #allocation0 [shape = 'u32[]', space=smem, size = 0x4, offset = 0x4, fixed_abs, tag = 'smem constant byte address 0x4 - core index']
  #allocation1 [shape = 'u32[144,128]{1,0:T(1,128)}', space=vmem, size = 0x12000, scoped, tag = 'internal scratch']
  #allocation2 [shape = 'bf16[8,768]{1,0:T(8,128)(2,1)}', space=vmem, size = 0x3000, scoped, tag = 'scratch operand']
  %s0 = inlined_call_operand.hbm [shape: bf16[8,256], index: 0, kind: input, shape index: {}]
  %s1 = inlined_call_operand.hbm [shape: bf16[128,256], index: 1, kind: input, shape index: {}]
  %s2 = inlined_call_operand.hbm [shape: f32[256,128], index: 2, kind: input, shape index: {}]
  %s3 = inlined_call_operand.hbm [shape: f32[128,768], index: 3, kind: input, shape index: {}]
  %s4 = inlined_call_operand.hbm [shape: f32[128,768], index: 4, kind: input, shape index: {}]
  %s5 = inlined_call_operand.hbm [shape: f32[8,128], index: 5, kind: output, shape index: {}]
  %s6 = sld [smem:[#allocation0]]
  $region54: #{tpu_custom_call.1} parent=0
    _
  %s8 = ssub.s32 1, %s6
  %s9 = scalar_select 0, %s8, %s6
  $region1: #{tpu_custom_call.1} parent=0
    #allocation3 [shape = 'u8[4096]{0}', space=vmem, size = 0x1000, scoped, tag = 'input window, operand 0, single buffered']
    #allocation4 [shape = 's32[1]{0}', space=sflag, size = 0x4, scoped, tag = 'scoped memory for tpu_custom_call.1']
    #allocation5 [shape = 's32[1]{0}', space=sflag, size = 0x4, scoped, tag = 'scoped memory for tpu_custom_call.1']
    #allocation6 [shape = 'u8[65536]{0}', space=vmem, size = 0x10000, scoped, tag = 'input window, operand 1, single buffered']
    #allocation7 [shape = 's32[1]{0}', space=sflag, size = 0x4, scoped, tag = 'scoped memory for tpu_custom_call.1']
    #allocation8 [shape = 'u8[131072]{0}', space=vmem, size = 0x20000, scoped, tag = 'input window, operand 2, single buffered']
    #allocation9 [shape = 'u8[393216]{0}', space=vmem, size = 0x60000, scoped, tag = 'input window, operand 3, single buffered']
    #allocation10 [shape = 's32[1]{0}', space=sflag, size = 0x4, scoped, tag = 'scoped memory for tpu_custom_call.1']
    #allocation11 [shape = 'u8[393216]{0}', space=vmem, size = 0x60000, scoped, tag = 'input window, operand 4, single buffered']
    #allocation12 [shape = 'u8[4096]{0}', space=vmem, size = 0x1000, scoped, tag = 'output window, operand 0, single buffered']
    %10 = vsyncpa [#allocation4], 0
    %11 = vsyncpa [#allocation7], 0
    %12 = vsyncpa [#allocation10], 0
    %13 = vsyncpa [#allocation5], 0
    // Predicated region
    $region2: #{tpu_custom_call.1} parent=1 // pred_check
      _
    $region3: #{tpu_custom_call.1} parent=1 // pred_check_branch
      %15 = sbr.rel (0) target = $region5
    $region4: #{tpu_custom_call.1} parent=1 // pred_region
      %s17 = ssub.s32 128, 128
      %18 = vsyncadd [#allocation4], %s17
      %s20 = sshll.u32 [#allocation3], 4
      %s21 = int_to_ptr.vmem [resolvable:$true] %s20
      %23 = dma.hbm_to_vmem [thread:$0]  %s0, 128, %s21, [#allocation4]
    $region5: #{tpu_custom_call.1} parent=1 // pred_fallthru
      _
    // Predicated region
    $region6: #{tpu_custom_call.1} parent=1 // pred_check
      _
    $region7: #{tpu_custom_call.1} parent=1 // pred_check_branch
      %25 = sbr.rel (0) target = $region9
    $region8: #{tpu_custom_call.1} parent=1 // pred_region
      %s27 = ssub.s32 2048, 2048
      %28 = vsyncadd [#allocation7], %s27
      %s29 = sshll.u32 [#allocation6], 4
      %s30 = int_to_ptr.vmem [resolvable:$true] %s29
      %35 = dma.hbm_to_vmem [thread:$0]  %s1, 2048, %s30, [#allocation7], 128, 128, 8
    $region9: #{tpu_custom_call.1} parent=1 // pred_fallthru
      _
    // Predicated region
    $region10: #{tpu_custom_call.1} parent=1 // pred_check
      _
    $region11: #{tpu_custom_call.1} parent=1 // pred_check_branch
      %37 = sbr.rel (0) target = $region13
    $region12: #{tpu_custom_call.1} parent=1 // pred_region
      %s39 = ssub.s32 4096, 4096
      %40 = vsyncadd [#allocation7], %s39
      %s41 = sshll.u32 [#allocation8], 4
      %s42 = int_to_ptr.vmem [resolvable:$true] %s41
      %47 = dma.hbm_to_vmem [thread:$0]  %s2, 4096, %s42, [#allocation7], 128, 128, 8
    $region13: #{tpu_custom_call.1} parent=1 // pred_fallthru
      _
    // Predicated region
    $region14: #{tpu_custom_call.1} parent=1 // pred_check
      _
    $region15: #{tpu_custom_call.1} parent=1 // pred_check_branch
      %49 = sbr.rel (0) target = $region17
    $region16: #{tpu_custom_call.1} parent=1 // pred_region
      %s51 = ssub.s32 12288, 12288
      %52 = vsyncadd [#allocation10], %s51
      %s53 = sshll.u32 [#allocation9], 4
      %s54 = int_to_ptr.vmem [resolvable:$true] %s53
      %59 = dma.hbm_to_vmem [thread:$0]  %s3, 12288, %s54, [#allocation10], 768, 768, 48
    $region17: #{tpu_custom_call.1} parent=1 // pred_fallthru
      _
    // Predicated region
    $region18: #{tpu_custom_call.1} parent=1 // pred_check
      _
    $region19: #{tpu_custom_call.1} parent=1 // pred_check_branch
      %61 = sbr.rel (0) target = $region21
    $region20: #{tpu_custom_call.1} parent=1 // pred_region
      %s63 = ssub.s32 12288, 12288
      %64 = vsyncadd [#allocation10], %s63
      %s65 = sshll.u32 [#allocation11], 4
      %s66 = int_to_ptr.vmem [resolvable:$true] %s65
      %71 = dma.hbm_to_vmem [thread:$0]  %s4, 12288, %s66, [#allocation10], 768, 768, 48
    $region21: #{tpu_custom_call.1} parent=1 // pred_fallthru
      _
    // Predicated region
    $region22: #{tpu_custom_call.1} parent=1 // pred_check
      _
    $region23: #{tpu_custom_call.1} parent=1 // pred_check_branch
      %73 = sbr.rel (0) target = $region25
    $region24: #{tpu_custom_call.1} parent=1 // pred_region
      %74 = dma.done [#allocation4], 128
    $region25: #{tpu_custom_call.1} parent=1 // pred_fallthru
      _
    // Predicated region
    $region26: #{tpu_custom_call.1} parent=1 // pred_check
      _
    $region27: #{tpu_custom_call.1} parent=1 // pred_check_branch
      %76 = sbr.rel (0) target = $region29
    $region28: #{tpu_custom_call.1} parent=1 // pred_region
      %77 = dma.done [#allocation7], 2048
    $region29: #{tpu_custom_call.1} parent=1 // pred_fallthru
      _
    // Predicated region
    $region30: #{tpu_custom_call.1} parent=1 // pred_check
      _
    $region31: #{tpu_custom_call.1} parent=1 // pred_check_branch
      %79 = sbr.rel (0) target = $region33
    $region32: #{tpu_custom_call.1} parent=1 // pred_region
      %80 = dma.done [#allocation7], 4096
    $region33: #{tpu_custom_call.1} parent=1 // pred_fallthru
      _
    // Predicated region
    $region34: #{tpu_custom_call.1} parent=1 // pred_check
      _
    $region35: #{tpu_custom_call.1} parent=1 // pred_check_branch
      %82 = sbr.rel (0) target = $region37
    $region36: #{tpu_custom_call.1} parent=1 // pred_region
      %83 = dma.done [#allocation10], 12288
    $region37: #{tpu_custom_call.1} parent=1 // pred_fallthru
      _
    // Predicated region
    $region38: #{tpu_custom_call.1} parent=1 // pred_check
      _
    $region39: #{tpu_custom_call.1} parent=1 // pred_check_branch
      %85 = sbr.rel (0) target = $region41
    $region40: #{tpu_custom_call.1} parent=1 // pred_region
      %86 = dma.done [#allocation10], 12288
    $region41: #{tpu_custom_call.1} parent=1 // pred_fallthru
      _
    %p88 = scmp.eq.s32.totalorder 0, 0
    // Predicated region
    $region42: #{tpu_custom_call.1} parent=1 // pred_check
      %p89 = pneg %p88
    $region43: #{tpu_custom_call.1} parent=1 // pred_check_branch
      %91 = sbr.rel (%p89) target = $region45
    $region44: #{tpu_custom_call.1} parent=1 // pred_region
      %v92 = vld [vmem:[#allocation3] sm:$0xff]
      %v93 = vunpack.c.l.bf16 %v92
      %v94 = vunpack.c.h.bf16 %v92
      %v95 = vtanh.pop %v93
      %v96 = vtanh.pop %v94
      %v97 = vmul.f32 %v95, %v95
      %v98 = vmul.f32 %v96, %v96
      %v99 = vld [vmem:[#allocation8] sm:$0xff]
      %v100 = vld [vmem:[#allocation8 + $0x8] sm:$0xff]
      %v101 = vld [vmem:[#allocation8 + $0x10] sm:$0xff]
      %v102 = vld [vmem:[#allocation8 + $0x18] sm:$0xff]
      %v103 = vld [vmem:[#allocation8 + $0x20] sm:$0xff]
      %v104 = vld [vmem:[#allocation8 + $0x28] sm:$0xff]
      %v105 = vld [vmem:[#allocation8 + $0x30] sm:$0xff]
      %v106 = vld [vmem:[#allocation8 + $0x38] sm:$0xff]
      %v107 = vld [vmem:[#allocation8 + $0x40] sm:$0xff]
      %v108 = vld [vmem:[#allocation8 + $0x48] sm:$0xff]
      %v109 = vld [vmem:[#allocation8 + $0x50] sm:$0xff]
      %v110 = vld [vmem:[#allocation8 + $0x58] sm:$0xff]
      %v111 = vld [vmem:[#allocation8 + $0x60] sm:$0xff]
      %v112 = vld [vmem:[#allocation8 + $0x68] sm:$0xff]
      %v113 = vld [vmem:[#allocation8 + $0x70] sm:$0xff]
      %v114 = vld [vmem:[#allocation8 + $0x78] sm:$0xff]
      %v115 = vld [vmem:[#allocation8 + $0x80] sm:$0xff]
      %v116 = vld [vmem:[#allocation8 + $0x88] sm:$0xff]
      %v117 = vld [vmem:[#allocation8 + $0x90] sm:$0xff]
      %v118 = vld [vmem:[#allocation8 + $0x98] sm:$0xff]
      %v119 = vld [vmem:[#allocation8 + $0xa0] sm:$0xff]
      %v120 = vld [vmem:[#allocation8 + $0xa8] sm:$0xff]
      %v121 = vld [vmem:[#allocation8 + $0xb0] sm:$0xff]
      %v122 = vld [vmem:[#allocation8 + $0xb8] sm:$0xff]
      %v123 = vld [vmem:[#allocation8 + $0xc0] sm:$0xff]
      %v124 = vld [vmem:[#allocation8 + $0xc8] sm:$0xff]
      %v125 = vld [vmem:[#allocation8 + $0xd0] sm:$0xff]
      %v126 = vld [vmem:[#allocation8 + $0xd8] sm:$0xff]
      %v127 = vld [vmem:[#allocation8 + $0xe0] sm:$0xff]
      %v128 = vld [vmem:[#allocation8 + $0xe8] sm:$0xff]
      %v129 = vld [vmem:[#allocation8 + $0xf0] sm:$0xff]
      %v130 = vld [vmem:[#allocation8 + $0xf8] sm:$0xff]
      %131 = vmatprep.subr.mxu0 0.0
      %132 = vmatpush1.msra.mxu0 %v99
      %133 = vmatprep.subr.mxu0 0.0
      %134 = vmatpush1.msra.mxu0 %v100
      %135 = vmatprep.subr.mxu0 0.0
      %136 = vmatpush1.msra.mxu0 %v101
      %137 = vmatprep.subr.mxu0 0.0
      %138 = vmatpush1.msra.mxu0 %v102
      %139 = vmatprep.subr.mxu0 0.0
      %140 = vmatpush1.msra.mxu0 %v103
      %141 = vmatprep.subr.mxu0 0.0
      %142 = vmatpush1.msra.mxu0 %v104
      %143 = vmatprep.subr.mxu0 0.0
      %144 = vmatpush1.msra.mxu0 %v105
      %145 = vmatprep.subr.mxu0 0.0
      %146 = vmatpush1.msra.mxu0 %v106
      %147 = vmatprep.subr.mxu0 0.0
      %148 = vmatpush1.msra.mxu0 %v107
      %149 = vmatprep.subr.mxu0 0.0
      %150 = vmatpush1.msra.mxu0 %v108
      %151 = vmatprep.subr.mxu0 0.0
      %152 = vmatpush1.msra.mxu0 %v109
      %153 = vmatprep.subr.mxu0 0.0
      %154 = vmatpush1.msra.mxu0 %v110
      %155 = vmatprep.subr.mxu0 0.0
      %156 = vmatpush1.msra.mxu0 %v111
      %157 = vmatprep.subr.mxu0 0.0
      %158 = vmatpush1.msra.mxu0 %v112
      %159 = vmatprep.subr.mxu0 0.0
      %160 = vmatpush1.msra.mxu0 %v113
      %161 = vmatprep.subr.mxu0 0.0
      %162 = vmatpush1.msra.mxu0 %v114
      %163 = vmatprep.subr.mxu0 0.0
      %164 = vmatpush1.msra.mxu0 %v115
      %165 = vmatprep.subr.mxu0 0.0
      %166 = vmatpush1.msra.mxu0 %v116
      %167 = vmatprep.subr.mxu0 0.0
      %168 = vmatpush1.msra.mxu0 %v117
      %169 = vmatprep.subr.mxu0 0.0
      %170 = vmatpush1.msra.mxu0 %v118
      %171 = vmatprep.subr.mxu0 0.0
      %172 = vmatpush1.msra.mxu0 %v119
      %173 = vmatprep.subr.mxu0 0.0
      %174 = vmatpush1.msra.mxu0 %v120
      %175 = vmatprep.subr.mxu0 0.0
      %176 = vmatpush1.msra.mxu0 %v121
      %177 = vmatprep.subr.mxu0 0.0
      %178 = vmatpush1.msra.mxu0 %v122
      %179 = vmatprep.subr.mxu0 0.0
      %180 = vmatpush1.msra.mxu0 %v123
      %181 = vmatprep.subr.mxu0 0.0
      %182 = vmatpush1.msra.mxu0 %v124
      %183 = vmatprep.subr.mxu0 0.0
      %184 = vmatpush1.msra.mxu0 %v125
      %185 = vmatprep.subr.mxu0 0.0
      %186 = vmatpush1.msra.mxu0 %v126
      %187 = vmatprep.subr.mxu0 0.0
      %188 = vmatpush1.msra.mxu0 %v127
      %189 = vmatprep.subr.mxu0 0.0
      %190 = vmatpush1.msra.mxu0 %v128
      %191 = vmatprep.subr.mxu0 0.0
      %192 = vmatpush1.msra.mxu0 %v129
      %193 = vmatprep.subr.mxu0 0.0
      %194 = vmatpush1.msra.mxu0 %v130
      %195 = vmatprep.mubr.f32.mxu0 %v98
      %196 = vmatmul.mubr.f32.gmra.mrb[0].mxu0 %v97
      %v197 = vpop.f32.mrb[0].mxu0
      %v198 = vadd.f32 0.0, %v197
      %v199 = vpop.f32.mrb[0].mxu0
      %200 = vdwg.mxu0
      %v201 = vmax.f32 %v198, 1e-24
      %v202 = vrsqrt.pop %v201
      %v203 = vld [vmem:[#allocation9] sm:$0xff]
      %v204 = vld [vmem:[#allocation9 + $0x8] sm:$0xff]
      %v205 = vld [vmem:[#allocation9 + $0x10] sm:$0xff]
      %v206 = vld [vmem:[#allocation9 + $0x18] sm:$0xff]
      %v207 = vld [vmem:[#allocation9 + $0x20] sm:$0xff]
      %v208 = vld [vmem:[#allocation9 + $0x28] sm:$0xff]
      %v209 = vld [vmem:[#allocation9 + $0x30] sm:$0xff]
      %v210 = vld [vmem:[#allocation9 + $0x38] sm:$0xff]
      %v211 = vld [vmem:[#allocation9 + $0x40] sm:$0xff]
      %v212 = vld [vmem:[#allocation9 + $0x48] sm:$0xff]
      %v213 = vld [vmem:[#allocation9 + $0x50] sm:$0xff]
      %v214 = vld [vmem:[#allocation9 + $0x58] sm:$0xff]
      %v215 = vld [vmem:[#allocation9 + $0x60] sm:$0xff]
      %v216 = vld [vmem:[#allocation9 + $0x68] sm:$0xff]
      %v217 = vld [vmem:[#allocation9 + $0x70] sm:$0xff]
      %v218 = vld [vmem:[#allocation9 + $0x78] sm:$0xff]
      %v219 = vld [vmem:[#allocation9 + $0x80] sm:$0xff]
      %v220 = vld [vmem:[#allocation9 + $0x88] sm:$0xff]
      %v221 = vld [vmem:[#allocation9 + $0x90] sm:$0xff]
      %v222 = vld [vmem:[#allocation9 + $0x98] sm:$0xff]
      %v223 = vld [vmem:[#allocation9 + $0xa0] sm:$0xff]
      %v224 = vld [vmem:[#allocation9 + $0xa8] sm:$0xff]
      %v225 = vld [vmem:[#allocation9 + $0xb0] sm:$0xff]
      %v226 = vld [vmem:[#allocation9 + $0xb8] sm:$0xff]
      %v227 = vld [vmem:[#allocation9 + $0xc0] sm:$0xff]
      %v228 = vld [vmem:[#allocation9 + $0xc8] sm:$0xff]
      %v229 = vld [vmem:[#allocation9 + $0xd0] sm:$0xff]
      %v230 = vld [vmem:[#allocation9 + $0xd8] sm:$0xff]
      %v231 = vld [vmem:[#allocation9 + $0xe0] sm:$0xff]
      %v232 = vld [vmem:[#allocation9 + $0xe8] sm:$0xff]
      %v233 = vld [vmem:[#allocation9 + $0xf0] sm:$0xff]
      %v234 = vld [vmem:[#allocation9 + $0xf8] sm:$0xff]
      %v235 = vld [vmem:[#allocation9 + $0x100] sm:$0xff]
      %v236 = vld [vmem:[#allocation9 + $0x108] sm:$0xff]
      %v237 = vld [vmem:[#allocation9 + $0x110] sm:$0xff]
      %v238 = vld [vmem:[#allocation9 + $0x118] sm:$0xff]
      %v239 = vld [vmem:[#allocation9 + $0x120] sm:$0xff]
      %v240 = vld [vmem:[#allocation9 + $0x128] sm:$0xff]
      %v241 = vld [vmem:[#allocation9 + $0x130] sm:$0xff]
      %v242 = vld [vmem:[#allocation9 + $0x138] sm:$0xff]
      %v243 = vld [vmem:[#allocation9 + $0x140] sm:$0xff]
      %v244 = vld [vmem:[#allocation9 + $0x148] sm:$0xff]
      %v245 = vld [vmem:[#allocation9 + $0x150] sm:$0xff]
      %v246 = vld [vmem:[#allocation9 + $0x158] sm:$0xff]
      %v247 = vld [vmem:[#allocation9 + $0x160] sm:$0xff]
      %v248 = vld [vmem:[#allocation9 + $0x168] sm:$0xff]
      %v249 = vld [vmem:[#allocation9 + $0x170] sm:$0xff]
      %v250 = vld [vmem:[#allocation9 + $0x178] sm:$0xff]
      %v251 = vld [vmem:[#allocation9 + $0x180] sm:$0xff]
      %v252 = vld [vmem:[#allocation9 + $0x188] sm:$0xff]
      %v253 = vld [vmem:[#allocation9 + $0x190] sm:$0xff]
      %v254 = vld [vmem:[#allocation9 + $0x198] sm:$0xff]
      %v255 = vld [vmem:[#allocation9 + $0x1a0] sm:$0xff]
      %v256 = vld [vmem:[#allocation9 + $0x1a8] sm:$0xff]
      %v257 = vld [vmem:[#allocation9 + $0x1b0] sm:$0xff]
      %v258 = vld [vmem:[#allocation9 + $0x1b8] sm:$0xff]
      %v259 = vld [vmem:[#allocation9 + $0x1c0] sm:$0xff]
      %v260 = vld [vmem:[#allocation9 + $0x1c8] sm:$0xff]
      %v261 = vld [vmem:[#allocation9 + $0x1d0] sm:$0xff]
      %v262 = vld [vmem:[#allocation9 + $0x1d8] sm:$0xff]
      %v263 = vld [vmem:[#allocation9 + $0x1e0] sm:$0xff]
      %v264 = vld [vmem:[#allocation9 + $0x1e8] sm:$0xff]
      %v265 = vld [vmem:[#allocation9 + $0x1f0] sm:$0xff]
      %v266 = vld [vmem:[#allocation9 + $0x1f8] sm:$0xff]
      %v267 = vld [vmem:[#allocation9 + $0x200] sm:$0xff]
      %v268 = vld [vmem:[#allocation9 + $0x208] sm:$0xff]
      %v269 = vld [vmem:[#allocation9 + $0x210] sm:$0xff]
      %v270 = vld [vmem:[#allocation9 + $0x218] sm:$0xff]
      %v271 = vld [vmem:[#allocation9 + $0x220] sm:$0xff]
      %v272 = vld [vmem:[#allocation9 + $0x228] sm:$0xff]
      %v273 = vld [vmem:[#allocation9 + $0x230] sm:$0xff]
      %v274 = vld [vmem:[#allocation9 + $0x238] sm:$0xff]
      %v275 = vld [vmem:[#allocation9 + $0x240] sm:$0xff]
      %v276 = vld [vmem:[#allocation9 + $0x248] sm:$0xff]
      %v277 = vld [vmem:[#allocation9 + $0x250] sm:$0xff]
      %v278 = vld [vmem:[#allocation9 + $0x258] sm:$0xff]
      %v279 = vld [vmem:[#allocation9 + $0x260] sm:$0xff]
      %v280 = vld [vmem:[#allocation9 + $0x268] sm:$0xff]
      %v281 = vld [vmem:[#allocation9 + $0x270] sm:$0xff]
      %v282 = vld [vmem:[#allocation9 + $0x278] sm:$0xff]
      %v283 = vld [vmem:[#allocation9 + $0x280] sm:$0xff]
      %v284 = vld [vmem:[#allocation9 + $0x288] sm:$0xff]
      %v285 = vld [vmem:[#allocation9 + $0x290] sm:$0xff]
      %v286 = vld [vmem:[#allocation9 + $0x298] sm:$0xff]
      %v287 = vld [vmem:[#allocation9 + $0x2a0] sm:$0xff]
      %v288 = vld [vmem:[#allocation9 + $0x2a8] sm:$0xff]
      %v289 = vld [vmem:[#allocation9 + $0x2b0] sm:$0xff]
      %v290 = vld [vmem:[#allocation9 + $0x2b8] sm:$0xff]
      %v291 = vld [vmem:[#allocation9 + $0x2c0] sm:$0xff]
      %v292 = vld [vmem:[#allocation9 + $0x2c8] sm:$0xff]
      %v293 = vld [vmem:[#allocation9 + $0x2d0] sm:$0xff]
      %v294 = vld [vmem:[#allocation9 + $0x2d8] sm:$0xff]
      %v295 = vld [vmem:[#allocation9 + $0x2e0] sm:$0xff]
      %v296 = vld [vmem:[#allocation9 + $0x2e8] sm:$0xff]
      %v297 = vld [vmem:[#allocation9 + $0x2f0] sm:$0xff]
      %v298 = vld [vmem:[#allocation9 + $0x2f8] sm:$0xff]
      %299 = vmatprep.subr.mxu0 %v204
      %300 = vmatpush1.msra.mxu0 %v203
      %301 = vmatprep.subr.mxu0 %v210
      %302 = vmatpush1.msra.mxu0 %v209
      %303 = vmatprep.subr.mxu0 %v216
      %304 = vmatpush1.msra.mxu0 %v215
      %305 = vmatprep.subr.mxu0 %v222
      %306 = vmatpush1.msra.mxu0 %v221
      %307 = vmatprep.subr.mxu0 %v228
      %308 = vmatpush1.msra.mxu0 %v227
      %309 = vmatprep.subr.mxu0 %v234
      %310 = vmatpush1.msra.mxu0 %v233
      %311 = vmatprep.subr.mxu0 %v240
      %312 = vmatpush1.msra.mxu0 %v239
      %313 = vmatprep.subr.mxu0 %v246
      %314 = vmatpush1.msra.mxu0 %v245
      %315 = vmatprep.subr.mxu0 %v252
      %316 = vmatpush1.msra.mxu0 %v251
      %317 = vmatprep.subr.mxu0 %v258
      %318 = vmatpush1.msra.mxu0 %v257
      %319 = vmatprep.subr.mxu0 %v264
      %320 = vmatpush1.msra.mxu0 %v263
      %321 = vmatprep.subr.mxu0 %v270
      %322 = vmatpush1.msra.mxu0 %v269
      %323 = vmatprep.subr.mxu0 %v276
      %324 = vmatpush1.msra.mxu0 %v275
      %325 = vmatprep.subr.mxu0 %v282
      %326 = vmatpush1.msra.mxu0 %v281
      %327 = vmatprep.subr.mxu0 %v288
      %328 = vmatpush1.msra.mxu0 %v287
      %329 = vmatprep.subr.mxu0 %v294
      %330 = vmatpush1.msra.mxu0 %v293
      %331 = vmatprep.subr.mxu0 0.0
      %332 = vmatpush1.msra.mxu0 0.0
      %333 = vmatprep.subr.mxu0 0.0
      %334 = vmatpush1.msra.mxu0 0.0
      %335 = vmatprep.subr.mxu0 0.0
      %336 = vmatpush1.msra.mxu0 0.0
      %337 = vmatprep.subr.mxu0 0.0
      %338 = vmatpush1.msra.mxu0 0.0
      %339 = vmatprep.subr.mxu0 0.0
      %340 = vmatpush1.msra.mxu0 0.0
      %341 = vmatprep.subr.mxu0 0.0
      %342 = vmatpush1.msra.mxu0 0.0
      %343 = vmatprep.subr.mxu0 0.0
      %344 = vmatpush1.msra.mxu0 0.0
      %345 = vmatprep.subr.mxu0 0.0
      %346 = vmatpush1.msra.mxu0 0.0
      %347 = vmatprep.subr.mxu0 0.0
      %348 = vmatpush1.msra.mxu0 0.0
      %349 = vmatprep.subr.mxu0 0.0
      %350 = vmatpush1.msra.mxu0 0.0
      %351 = vmatprep.subr.mxu0 0.0
      %352 = vmatpush1.msra.mxu0 0.0
      %353 = vmatprep.subr.mxu0 0.0
      %354 = vmatpush1.msra.mxu0 0.0
      %355 = vmatprep.subr.mxu0 0.0
      %356 = vmatpush1.msra.mxu0 0.0
      %357 = vmatprep.subr.mxu0 0.0
      %358 = vmatpush1.msra.mxu0 0.0
      %359 = vmatprep.subr.mxu0 0.0
      %360 = vmatpush1.msra.mxu0 0.0
      %361 = vmatprep.subr.mxu0 0.0
      %362 = vmatpush1.msra.mxu0 0.0
      %363 = vmatprep.mubr.f32.mxu0 0.0
      %364 = vmatmul.mubr.f32.gmra.mrb[0].mxu0 %v202
      %v365 = vpop.f32.mrb[0].mxu0
      %v366 = vadd.f32 0.0, %v365
      %v367 = vpop.f32.mrb[0].mxu0
      %v368 = vadd.f32 0.0, %v367
      %369 = vdwg.mxu0
      %370 = vmatprep.subr.mxu0 %v206
      %371 = vmatpush1.msra.mxu0 %v205
      %372 = vmatprep.subr.mxu0 %v212
      %373 = vmatpush1.msra.mxu0 %v211
      %374 = vmatprep.subr.mxu0 %v218
      %375 = vmatpush1.msra.mxu0 %v217
      %376 = vmatprep.subr.mxu0 %v224
      %377 = vmatpush1.msra.mxu0 %v223
      %378 = vmatprep.subr.mxu0 %v230
      %379 = vmatpush1.msra.mxu0 %v229
      %380 = vmatprep.subr.mxu0 %v236
      %381 = vmatpush1.msra.mxu0 %v235
      %382 = vmatprep.subr.mxu0 %v242
      %383 = vmatpush1.msra.mxu0 %v241
      %384 = vmatprep.subr.mxu0 %v248
      %385 = vmatpush1.msra.mxu0 %v247
      %386 = vmatprep.subr.mxu0 %v254
      %387 = vmatpush1.msra.mxu0 %v253
      %388 = vmatprep.subr.mxu0 %v260
      %389 = vmatpush1.msra.mxu0 %v259
      %390 = vmatprep.subr.mxu0 %v266
      %391 = vmatpush1.msra.mxu0 %v265
      %392 = vmatprep.subr.mxu0 %v272
      %393 = vmatpush1.msra.mxu0 %v271
      %394 = vmatprep.subr.mxu0 %v278
      %395 = vmatpush1.msra.mxu0 %v277
      %396 = vmatprep.subr.mxu0 %v284
      %397 = vmatpush1.msra.mxu0 %v283
      %398 = vmatprep.subr.mxu0 %v290
      %399 = vmatpush1.msra.mxu0 %v289
      %400 = vmatprep.subr.mxu0 %v296
      %401 = vmatpush1.msra.mxu0 %v295
      %402 = vmatprep.subr.mxu0 0.0
      %403 = vmatpush1.msra.mxu0 0.0
      %404 = vmatprep.subr.mxu0 0.0
      %405 = vmatpush1.msra.mxu0 0.0
      %406 = vmatprep.subr.mxu0 0.0
      %407 = vmatpush1.msra.mxu0 0.0
      %408 = vmatprep.subr.mxu0 0.0
      %409 = vmatpush1.msra.mxu0 0.0
      %410 = vmatprep.subr.mxu0 0.0
      %411 = vmatpush1.msra.mxu0 0.0
      %412 = vmatprep.subr.mxu0 0.0
      %413 = vmatpush1.msra.mxu0 0.0
      %414 = vmatprep.subr.mxu0 0.0
      %415 = vmatpush1.msra.mxu0 0.0
      %416 = vmatprep.subr.mxu0 0.0
      %417 = vmatpush1.msra.mxu0 0.0
      %418 = vmatprep.subr.mxu0 0.0
      %419 = vmatpush1.msra.mxu0 0.0
      %420 = vmatprep.subr.mxu0 0.0
      %421 = vmatpush1.msra.mxu0 0.0
      %422 = vmatprep.subr.mxu0 0.0
      %423 = vmatpush1.msra.mxu0 0.0
      %424 = vmatprep.subr.mxu0 0.0
      %425 = vmatpush1.msra.mxu0 0.0
      %426 = vmatprep.subr.mxu0 0.0
      %427 = vmatpush1.msra.mxu0 0.0
      %428 = vmatprep.subr.mxu0 0.0
      %429 = vmatpush1.msra.mxu0 0.0
      %430 = vmatprep.subr.mxu0 0.0
      %431 = vmatpush1.msra.mxu0 0.0
      %432 = vmatprep.subr.mxu0 0.0
      %433 = vmatpush1.msra.mxu0 0.0
      %434 = vmatprep.mubr.f32.mxu0 0.0
      %435 = vmatmul.mubr.f32.gmra.mrb[0].mxu0 %v202
      %v436 = vpop.f32.mrb[0].mxu0
      %v437 = vadd.f32 0.0, %v436
      %v438 = vpop.f32.mrb[0].mxu0
      %v439 = vadd.f32 0.0, %v438
      %440 = vdwg.mxu0
      %441 = vmatprep.subr.mxu0 %v208
      %442 = vmatpush1.msra.mxu0 %v207
      %443 = vmatprep.subr.mxu0 %v214
      %444 = vmatpush1.msra.mxu0 %v213
      %445 = vmatprep.subr.mxu0 %v220
      %446 = vmatpush1.msra.mxu0 %v219
      %447 = vmatprep.subr.mxu0 %v226
      %448 = vmatpush1.msra.mxu0 %v225
      %449 = vmatprep.subr.mxu0 %v232
      %450 = vmatpush1.msra.mxu0 %v231
      %451 = vmatprep.subr.mxu0 %v238
      %452 = vmatpush1.msra.mxu0 %v237
      %453 = vmatprep.subr.mxu0 %v244
      %454 = vmatpush1.msra.mxu0 %v243
      %455 = vmatprep.subr.mxu0 %v250
      %456 = vmatpush1.msra.mxu0 %v249
      %457 = vmatprep.subr.mxu0 %v256
      %458 = vmatpush1.msra.mxu0 %v255
      %459 = vmatprep.subr.mxu0 %v262
      %460 = vmatpush1.msra.mxu0 %v261
      %461 = vmatprep.subr.mxu0 %v268
      %462 = vmatpush1.msra.mxu0 %v267
      %463 = vmatprep.subr.mxu0 %v274
      %464 = vmatpush1.msra.mxu0 %v273
      %465 = vmatprep.subr.mxu0 %v280
      %466 = vmatpush1.msra.mxu0 %v279
      %467 = vmatprep.subr.mxu0 %v286
      %468 = vmatpush1.msra.mxu0 %v285
      %469 = vmatprep.subr.mxu0 %v292
      %470 = vmatpush1.msra.mxu0 %v291
      %471 = vmatprep.subr.mxu0 %v298
      %472 = vmatpush1.msra.mxu0 %v297
      %473 = vmatprep.subr.mxu0 0.0
      %474 = vmatpush1.msra.mxu0 0.0
      %475 = vmatprep.subr.mxu0 0.0
      %476 = vmatpush1.msra.mxu0 0.0
      %477 = vmatprep.subr.mxu0 0.0
      %478 = vmatpush1.msra.mxu0 0.0
      %479 = vmatprep.subr.mxu0 0.0
      %480 = vmatpush1.msra.mxu0 0.0
      %481 = vmatprep.subr.mxu0 0.0
      %482 = vmatpush1.msra.mxu0 0.0
      %483 = vmatprep.subr.mxu0 0.0
      %484 = vmatpush1.msra.mxu0 0.0
      %485 = vmatprep.subr.mxu0 0.0
      %486 = vmatpush1.msra.mxu0 0.0
      %487 = vmatprep.subr.mxu0 0.0
      %488 = vmatpush1.msra.mxu0 0.0
      %489 = vmatprep.subr.mxu0 0.0
      %490 = vmatpush1.msra.mxu0 0.0
      %491 = vmatprep.subr.mxu0 0.0
      %492 = vmatpush1.msra.mxu0 0.0
      %493 = vmatprep.subr.mxu0 0.0
      %494 = vmatpush1.msra.mxu0 0.0
      %495 = vmatprep.subr.mxu0 0.0
      %496 = vmatpush1.msra.mxu0 0.0
      %497 = vmatprep.subr.mxu0 0.0
      %498 = vmatpush1.msra.mxu0 0.0
      %499 = vmatprep.subr.mxu0 0.0
      %500 = vmatpush1.msra.mxu0 0.0
      %501 = vmatprep.subr.mxu0 0.0
      %502 = vmatpush1.msra.mxu0 0.0
      %503 = vmatprep.subr.mxu0 0.0
      %504 = vmatpush1.msra.mxu0 0.0
      %505 = vmatprep.mubr.f32.mxu0 0.0
      %506 = vmatmul.mubr.f32.gmra.mrb[0].mxu0 %v202
      %v507 = vpop.f32.mrb[0].mxu0
      %v508 = vadd.f32 0.0, %v507
      %v509 = vpop.f32.mrb[0].mxu0
      %v510 = vadd.f32 0.0, %v509
      %511 = vdwg.mxu0
      %v512 = vmul.f32 %v95, %v366
      %v513 = vmul.f32 %v96, %v368
      %v514 = vpack.c.bf16 %v512, %v512
      %v515 = vpack.c.bf16 %v513, %v513
      %v518 = vunpack.c.l.b16 %v514
      %v519 = vunpack.c.l.b16 %v515
      %v520 = vpack.c.b16 %v519, %v518
      %522 = vst [vmem:[#allocation2] sm:$0xff] %v520
      %v523 = vmul.f32 %v95, %v437
      %v524 = vmul.f32 %v96, %v439
      %v525 = vpack.c.bf16 %v523, %v523
      %v526 = vpack.c.bf16 %v524, %v524
      %v529 = vunpack.c.l.b16 %v525
      %v530 = vunpack.c.l.b16 %v526
      %v531 = vpack.c.b16 %v530, %v529
      %533 = vst [vmem:[#allocation2 + $0x8] sm:$0xff] %v531
      %v534 = vmul.f32 %v95, %v508
      %v535 = vmul.f32 %v96, %v510
      %v536 = vpack.c.bf16 %v534, %v534
      %v537 = vpack.c.bf16 %v535, %v535
      %v540 = vunpack.c.l.b16 %v536
      %v541 = vunpack.c.l.b16 %v537
      %v542 = vpack.c.b16 %v541, %v540
      %544 = vst [vmem:[#allocation2 + $0x10] sm:$0xff] %v542
    $region45: #{tpu_custom_call.1} parent=1 // pred_fallthru
      _
    %v545 = vld [vmem:[#allocation6] sm:$0xff]
    %v546 = vld [vmem:[#allocation6 + $0x8] sm:$0xff]
    %v547 = vld [vmem:[#allocation6 + $0x10] sm:$0xff]
    %v548 = vld [vmem:[#allocation6 + $0x18] sm:$0xff]
    %v549 = vld [vmem:[#allocation6 + $0x20] sm:$0xff]
    %v550 = vld [vmem:[#allocation6 + $0x28] sm:$0xff]
    %v551 = vld [vmem:[#allocation6 + $0x30] sm:$0xff]
    %v552 = vld [vmem:[#allocation6 + $0x38] sm:$0xff]
    %v553 = vld [vmem:[#allocation6 + $0x40] sm:$0xff]
    %v554 = vld [vmem:[#allocation6 + $0x48] sm:$0xff]
    %v555 = vld [vmem:[#allocation6 + $0x50] sm:$0xff]
    %v556 = vld [vmem:[#allocation6 + $0x58] sm:$0xff]
    %v557 = vld [vmem:[#allocation6 + $0x60] sm:$0xff]
    %v558 = vld [vmem:[#allocation6 + $0x68] sm:$0xff]
    %v559 = vld [vmem:[#allocation6 + $0x70] sm:$0xff]
    %v560 = vld [vmem:[#allocation6 + $0x78] sm:$0xff]
    %v561 = vunpack.c.l.bf16 %v545
    %v562 = vunpack.c.h.bf16 %v545
    %v563 = vunpack.c.l.bf16 %v546
    %v564 = vunpack.c.h.bf16 %v546
    %v565 = vunpack.c.l.bf16 %v547
    %v566 = vunpack.c.h.bf16 %v547
    %v567 = vunpack.c.l.bf16 %v548
    %v568 = vunpack.c.h.bf16 %v548
    %v569 = vunpack.c.l.bf16 %v549
    %v570 = vunpack.c.h.bf16 %v549
    %v571 = vunpack.c.l.bf16 %v550
    %v572 = vunpack.c.h.bf16 %v550
    %v573 = vunpack.c.l.bf16 %v551
    %v574 = vunpack.c.h.bf16 %v551
    %v575 = vunpack.c.l.bf16 %v552
    %v576 = vunpack.c.h.bf16 %v552
    %v577 = vunpack.c.l.bf16 %v553
    %v578 = vunpack.c.h.bf16 %v553
    %v579 = vunpack.c.l.bf16 %v554
    %v580 = vunpack.c.h.bf16 %v554
    %v581 = vunpack.c.l.bf16 %v555
    %v582 = vunpack.c.h.bf16 %v555
    %v583 = vunpack.c.l.bf16 %v556
    %v584 = vunpack.c.h.bf16 %v556
    %v585 = vunpack.c.l.bf16 %v557
    %v586 = vunpack.c.h.bf16 %v557
    %v587 = vunpack.c.l.bf16 %v558
    %v588 = vunpack.c.h.bf16 %v558
    %v589 = vunpack.c.l.bf16 %v559
    %v590 = vunpack.c.h.bf16 %v559
    %v591 = vunpack.c.l.bf16 %v560
    %v592 = vunpack.c.h.bf16 %v560
    %v593 = vtanh.pop %v561
    %v594 = vtanh.pop %v562
    %v595 = vtanh.pop %v563
    %v596 = vtanh.pop %v564
    %v597 = vtanh.pop %v565
    %v598 = vtanh.pop %v566
    %v599 = vtanh.pop %v567
    %v600 = vtanh.pop %v568
    %v601 = vtanh.pop %v569
    %v602 = vtanh.pop %v570
    %v603 = vtanh.pop %v571
    %v604 = vtanh.pop %v572
    %v605 = vtanh.pop %v573
    %v606 = vtanh.pop %v574
    %v607 = vtanh.pop %v575
    %v608 = vtanh.pop %v576
    %v609 = vtanh.pop %v577
    %v610 = vtanh.pop %v578
    %v611 = vtanh.pop %v579
    %v612 = vtanh.pop %v580
    %v613 = vtanh.pop %v581
    %v614 = vtanh.pop %v582
    %v615 = vtanh.pop %v583
    %v616 = vtanh.pop %v584
    %v617 = vtanh.pop %v585
    %v618 = vtanh.pop %v586
    %v619 = vtanh.pop %v587
    %v620 = vtanh.pop %v588
    %v621 = vtanh.pop %v589
    %v622 = vtanh.pop %v590
    %v623 = vtanh.pop %v591
    %v624 = vtanh.pop %v592
    %v625 = vmul.f32 %v593, %v593
    %v626 = vmul.f32 %v594, %v594
    %v627 = vmul.f32 %v595, %v595
    %v628 = vmul.f32 %v596, %v596
    %v629 = vmul.f32 %v597, %v597
    %v630 = vmul.f32 %v598, %v598
    %v631 = vmul.f32 %v599, %v599
    %v632 = vmul.f32 %v600, %v600
    %v633 = vmul.f32 %v601, %v601
    %v634 = vmul.f32 %v602, %v602
    %v635 = vmul.f32 %v603, %v603
    %v636 = vmul.f32 %v604, %v604
    %v637 = vmul.f32 %v605, %v605
    %v638 = vmul.f32 %v606, %v606
    %v639 = vmul.f32 %v607, %v607
    %v640 = vmul.f32 %v608, %v608
    %v641 = vmul.f32 %v609, %v609
    %v642 = vmul.f32 %v610, %v610
    %v643 = vmul.f32 %v611, %v611
    %v644 = vmul.f32 %v612, %v612
    %v645 = vmul.f32 %v613, %v613
    %v646 = vmul.f32 %v614, %v614
    %v647 = vmul.f32 %v615, %v615
    %v648 = vmul.f32 %v616, %v616
    %v649 = vmul.f32 %v617, %v617
    %v650 = vmul.f32 %v618, %v618
    %v651 = vmul.f32 %v619, %v619
    %v652 = vmul.f32 %v620, %v620
    %v653 = vmul.f32 %v621, %v621
    %v654 = vmul.f32 %v622, %v622
    %v655 = vmul.f32 %v623, %v623
    %v656 = vmul.f32 %v624, %v624
    %v657 = vld [vmem:[#allocation8] sm:$0xff]
    %v658 = vld [vmem:[#allocation8 + $0x8] sm:$0xff]
    %v659 = vld [vmem:[#allocation8 + $0x10] sm:$0xff]
    %v660 = vld [vmem:[#allocation8 + $0x18] sm:$0xff]
    %v661 = vld [vmem:[#allocation8 + $0x20] sm:$0xff]
    %v662 = vld [vmem:[#allocation8 + $0x28] sm:$0xff]
    %v663 = vld [vmem:[#allocation8 + $0x30] sm:$0xff]
    %v664 = vld [vmem:[#allocation8 + $0x38] sm:$0xff]
    %v665 = vld [vmem:[#allocation8 + $0x40] sm:$0xff]
    %v666 = vld [vmem:[#allocation8 + $0x48] sm:$0xff]
    %v667 = vld [vmem:[#allocation8 + $0x50] sm:$0xff]
    %v668 = vld [vmem:[#allocation8 + $0x58] sm:$0xff]
    %v669 = vld [vmem:[#allocation8 + $0x60] sm:$0xff]
    %v670 = vld [vmem:[#allocation8 + $0x68] sm:$0xff]
    %v671 = vld [vmem:[#allocation8 + $0x70] sm:$0xff]
    %v672 = vld [vmem:[#allocation8 + $0x78] sm:$0xff]
    %v673 = vld [vmem:[#allocation8 + $0x80] sm:$0xff]
    %v674 = vld [vmem:[#allocation8 + $0x88] sm:$0xff]
    %v675 = vld [vmem:[#allocation8 + $0x90] sm:$0xff]
    %v676 = vld [vmem:[#allocation8 + $0x98] sm:$0xff]
    %v677 = vld [vmem:[#allocation8 + $0xa0] sm:$0xff]
    %v678 = vld [vmem:[#allocation8 + $0xa8] sm:$0xff]
    %v679 = vld [vmem:[#allocation8 + $0xb0] sm:$0xff]
    %v680 = vld [vmem:[#allocation8 + $0xb8] sm:$0xff]
    %v681 = vld [vmem:[#allocation8 + $0xc0] sm:$0xff]
    %v682 = vld [vmem:[#allocation8 + $0xc8] sm:$0xff]
    %v683 = vld [vmem:[#allocation8 + $0xd0] sm:$0xff]
    %v684 = vld [vmem:[#allocation8 + $0xd8] sm:$0xff]
    %v685 = vld [vmem:[#allocation8 + $0xe0] sm:$0xff]
    %v686 = vld [vmem:[#allocation8 + $0xe8] sm:$0xff]
    %v687 = vld [vmem:[#allocation8 + $0xf0] sm:$0xff]
    %v688 = vld [vmem:[#allocation8 + $0xf8] sm:$0xff]
    %689 = vmatprep.subr.mxu0 0.0
    %690 = vmatpush1.msra.mxu0 %v657
    %691 = vmatprep.subr.mxu0 0.0
    %692 = vmatpush1.msra.mxu0 %v658
    %693 = vmatprep.subr.mxu0 0.0
    %694 = vmatpush1.msra.mxu0 %v659
    %695 = vmatprep.subr.mxu0 0.0
    %696 = vmatpush1.msra.mxu0 %v660
    %697 = vmatprep.subr.mxu0 0.0
    %698 = vmatpush1.msra.mxu0 %v661
    %699 = vmatprep.subr.mxu0 0.0
    %700 = vmatpush1.msra.mxu0 %v662
    %701 = vmatprep.subr.mxu0 0.0
    %702 = vmatpush1.msra.mxu0 %v663
    %703 = vmatprep.subr.mxu0 0.0
    %704 = vmatpush1.msra.mxu0 %v664
    %705 = vmatprep.subr.mxu0 0.0
    %706 = vmatpush1.msra.mxu0 %v665
    %707 = vmatprep.subr.mxu0 0.0
    %708 = vmatpush1.msra.mxu0 %v666
    %709 = vmatprep.subr.mxu0 0.0
    %710 = vmatpush1.msra.mxu0 %v667
    %711 = vmatprep.subr.mxu0 0.0
    %712 = vmatpush1.msra.mxu0 %v668
    %713 = vmatprep.subr.mxu0 0.0
    %714 = vmatpush1.msra.mxu0 %v669
    %715 = vmatprep.subr.mxu0 0.0
    %716 = vmatpush1.msra.mxu0 %v670
    %717 = vmatprep.subr.mxu0 0.0
    %718 = vmatpush1.msra.mxu0 %v671
    %719 = vmatprep.subr.mxu0 0.0
    %720 = vmatpush1.msra.mxu0 %v672
    %721 = vmatprep.subr.mxu0 0.0
    %722 = vmatpush1.msra.mxu0 %v673
    %723 = vmatprep.subr.mxu0 0.0
    %724 = vmatpush1.msra.mxu0 %v674
    %725 = vmatprep.subr.mxu0 0.0
    %726 = vmatpush1.msra.mxu0 %v675
    %727 = vmatprep.subr.mxu0 0.0
    %728 = vmatpush1.msra.mxu0 %v676
    %729 = vmatprep.subr.mxu0 0.0
    %730 = vmatpush1.msra.mxu0 %v677
    %731 = vmatprep.subr.mxu0 0.0
    %732 = vmatpush1.msra.mxu0 %v678
    %733 = vmatprep.subr.mxu0 0.0
    %734 = vmatpush1.msra.mxu0 %v679
    %735 = vmatprep.subr.mxu0 0.0
    %736 = vmatpush1.msra.mxu0 %v680
    %737 = vmatprep.subr.mxu0 0.0
    %738 = vmatpush1.msra.mxu0 %v681
    %739 = vmatprep.subr.mxu0 0.0
    %740 = vmatpush1.msra.mxu0 %v682
    %741 = vmatprep.subr.mxu0 0.0
    %742 = vmatpush1.msra.mxu0 %v683
    %743 = vmatprep.subr.mxu0 0.0
    %744 = vmatpush1.msra.mxu0 %v684
    %745 = vmatprep.subr.mxu0 0.0
    %746 = vmatpush1.msra.mxu0 %v685
    %747 = vmatprep.subr.mxu0 0.0
    %748 = vmatpush1.msra.mxu0 %v686
    %749 = vmatprep.subr.mxu0 0.0
    %750 = vmatpush1.msra.mxu0 %v687
    %751 = vmatprep.subr.mxu0 0.0
    %752 = vmatpush1.msra.mxu0 %v688
    %753 = vmatprep.mubr.f32.mxu0 %v626
    %754 = vmatmul.mubr.f32.gmra.mrb[0].mxu0 %v625
    %v755 = vpop.f32.mrb[0].mxu0
    %v756 = vadd.f32 0.0, %v755
    %v757 = vpop.f32.mrb[0].mxu0
    %758 = vmatprep.mubr.f32.mxu0 %v628
    %759 = vmatmul.mubr.f32.gmra.mrb[0].mxu0 %v627
    %v760 = vpop.f32.mrb[0].mxu0
    %v761 = vadd.f32 0.0, %v760
    %v762 = vpop.f32.mrb[0].mxu0
    %763 = vmatprep.mubr.f32.mxu0 %v630
    %764 = vmatmul.mubr.f32.gmra.mrb[0].mxu0 %v629
    %v765 = vpop.f32.mrb[0].mxu0
    %v766 = vadd.f32 0.0, %v765
    %v767 = vpop.f32.mrb[0].mxu0
    %768 = vmatprep.mubr.f32.mxu0 %v632
    %769 = vmatmul.mubr.f32.gmra.mrb[0].mxu0 %v631
    %v770 = vpop.f32.mrb[0].mxu0
    %v771 = vadd.f32 0.0, %v770
    %v772 = vpop.f32.mrb[0].mxu0
    %773 = vmatprep.mubr.f32.mxu0 %v634
    %774 = vmatmul.mubr.f32.gmra.mrb[0].mxu0 %v633
    %v775 = vpop.f32.mrb[0].mxu0
    %v776 = vadd.f32 0.0, %v775
    %v777 = vpop.f32.mrb[0].mxu0
    %778 = vmatprep.mubr.f32.mxu0 %v636
    %779 = vmatmul.mubr.f32.gmra.mrb[0].mxu0 %v635
    %v780 = vpop.f32.mrb[0].mxu0
    %v781 = vadd.f32 0.0, %v780
    %v782 = vpop.f32.mrb[0].mxu0
    %783 = vmatprep.mubr.f32.mxu0 %v638
    %784 = vmatmul.mubr.f32.gmra.mrb[0].mxu0 %v637
    %v785 = vpop.f32.mrb[0].mxu0
    %v786 = vadd.f32 0.0, %v785
    %v787 = vpop.f32.mrb[0].mxu0
    %788 = vmatprep.mubr.f32.mxu0 %v640
    %789 = vmatmul.mubr.f32.gmra.mrb[0].mxu0 %v639
    %v790 = vpop.f32.mrb[0].mxu0
    %v791 = vadd.f32 0.0, %v790
    %v792 = vpop.f32.mrb[0].mxu0
    %793 = vmatprep.mubr.f32.mxu0 %v642
    %794 = vmatmul.mubr.f32.gmra.mrb[0].mxu0 %v641
    %v795 = vpop.f32.mrb[0].mxu0
    %v796 = vadd.f32 0.0, %v795
    %v797 = vpop.f32.mrb[0].mxu0
    %798 = vmatprep.mubr.f32.mxu0 %v644
    %799 = vmatmul.mubr.f32.gmra.mrb[0].mxu0 %v643
    %v800 = vpop.f32.mrb[0].mxu0
    %v801 = vadd.f32 0.0, %v800
    %v802 = vpop.f32.mrb[0].mxu0
    %803 = vmatprep.mubr.f32.mxu0 %v646
    %804 = vmatmul.mubr.f32.gmra.mrb[0].mxu0 %v645
    %v805 = vpop.f32.mrb[0].mxu0
    %v806 = vadd.f32 0.0, %v805
    %v807 = vpop.f32.mrb[0].mxu0
    %808 = vmatprep.mubr.f32.mxu0 %v648
    %809 = vmatmul.mubr.f32.gmra.mrb[0].mxu0 %v647
    %v810 = vpop.f32.mrb[0].mxu0
    %v811 = vadd.f32 0.0, %v810
    %v812 = vpop.f32.mrb[0].mxu0
    %813 = vmatprep.mubr.f32.mxu0 %v650
    %814 = vmatmul.mubr.f32.gmra.mrb[0].mxu0 %v649
    %v815 = vpop.f32.mrb[0].mxu0
    %v816 = vadd.f32 0.0, %v815
    %v817 = vpop.f32.mrb[0].mxu0
    %818 = vmatprep.mubr.f32.mxu0 %v652
    %819 = vmatmul.mubr.f32.gmra.mrb[0].mxu0 %v651
    %v820 = vpop.f32.mrb[0].mxu0
    %v821 = vadd.f32 0.0, %v820
    %v822 = vpop.f32.mrb[0].mxu0
    %823 = vmatprep.mubr.f32.mxu0 %v654
    %824 = vmatmul.mubr.f32.gmra.mrb[0].mxu0 %v653
    %v825 = vpop.f32.mrb[0].mxu0
    %v826 = vadd.f32 0.0, %v825
    %v827 = vpop.f32.mrb[0].mxu0
    %828 = vmatprep.mubr.f32.mxu0 %v656
    %829 = vmatmul.mubr.f32.gmra.mrb[0].mxu0 %v655
    %v830 = vpop.f32.mrb[0].mxu0
    %v831 = vadd.f32 0.0, %v830
    %v832 = vpop.f32.mrb[0].mxu0
    %833 = vdwg.mxu0
    %v834 = vmax.f32 %v756, 1e-24
    %v835 = vmax.f32 %v761, 1e-24
    %v836 = vmax.f32 %v766, 1e-24
    %v837 = vmax.f32 %v771, 1e-24
    %v838 = vmax.f32 %v776, 1e-24
    %v839 = vmax.f32 %v781, 1e-24
    %v840 = vmax.f32 %v786, 1e-24
    %v841 = vmax.f32 %v791, 1e-24
    %v842 = vmax.f32 %v796, 1e-24
    %v843 = vmax.f32 %v801, 1e-24
    %v844 = vmax.f32 %v806, 1e-24
    %v845 = vmax.f32 %v811, 1e-24
    %v846 = vmax.f32 %v816, 1e-24
    %v847 = vmax.f32 %v821, 1e-24
    %v848 = vmax.f32 %v826, 1e-24
    %v849 = vmax.f32 %v831, 1e-24
    %v850 = vrsqrt.pop %v834
    %v851 = vrsqrt.pop %v835
    %v852 = vrsqrt.pop %v836
    %v853 = vrsqrt.pop %v837
    %v854 = vrsqrt.pop %v838
    %v855 = vrsqrt.pop %v839
    %v856 = vrsqrt.pop %v840
    %v857 = vrsqrt.pop %v841
    %v858 = vrsqrt.pop %v842
    %v859 = vrsqrt.pop %v843
    %v860 = vrsqrt.pop %v844
    %v861 = vrsqrt.pop %v845
    %v862 = vrsqrt.pop %v846
    %v863 = vrsqrt.pop %v847
    %v864 = vrsqrt.pop %v848
    %v865 = vrsqrt.pop %v849
    %v866 = vld [vmem:[#allocation11] sm:$0xff]
    %v867 = vld [vmem:[#allocation11 + $0x8] sm:$0xff]
    %v868 = vld [vmem:[#allocation11 + $0x10] sm:$0xff]
    %v869 = vld [vmem:[#allocation11 + $0x18] sm:$0xff]
    %v870 = vld [vmem:[#allocation11 + $0x20] sm:$0xff]
    %v871 = vld [vmem:[#allocation11 + $0x28] sm:$0xff]
    %v872 = vld [vmem:[#allocation11 + $0x30] sm:$0xff]
    %v873 = vld [vmem:[#allocation11 + $0x38] sm:$0xff]
    %v874 = vld [vmem:[#allocation11 + $0x40] sm:$0xff]
    %v875 = vld [vmem:[#allocation11 + $0x48] sm:$0xff]
    %v876 = vld [vmem:[#allocation11 + $0x50] sm:$0xff]
    %v877 = vld [vmem:[#allocation11 + $0x58] sm:$0xff]
    %v878 = vld [vmem:[#allocation11 + $0x60] sm:$0xff]
    %v879 = vld [vmem:[#allocation11 + $0x68] sm:$0xff]
    %v880 = vld [vmem:[#allocation11 + $0x70] sm:$0xff]
    %v881 = vld [vmem:[#allocation11 + $0x78] sm:$0xff]
    %v882 = vld [vmem:[#allocation11 + $0x80] sm:$0xff]
    %v883 = vld [vmem:[#allocation11 + $0x88] sm:$0xff]
    %v884 = vld [vmem:[#allocation11 + $0x90] sm:$0xff]
    %v885 = vld [vmem:[#allocation11 + $0x98] sm:$0xff]
    %v886 = vld [vmem:[#allocation11 + $0xa0] sm:$0xff]
    %v887 = vld [vmem:[#allocation11 + $0xa8] sm:$0xff]
    %v888 = vld [vmem:[#allocation11 + $0xb0] sm:$0xff]
    %v889 = vld [vmem:[#allocation11 + $0xb8] sm:$0xff]
    %v890 = vld [vmem:[#allocation11 + $0xc0] sm:$0xff]
    %v891 = vld [vmem:[#allocation11 + $0xc8] sm:$0xff]
    %v892 = vld [vmem:[#allocation11 + $0xd0] sm:$0xff]
    %v893 = vld [vmem:[#allocation11 + $0xd8] sm:$0xff]
    %v894 = vld [vmem:[#allocation11 + $0xe0] sm:$0xff]
    %v895 = vld [vmem:[#allocation11 + $0xe8] sm:$0xff]
    %v896 = vld [vmem:[#allocation11 + $0xf0] sm:$0xff]
    %v897 = vld [vmem:[#allocation11 + $0xf8] sm:$0xff]
    %v898 = vld [vmem:[#allocation11 + $0x100] sm:$0xff]
    %v899 = vld [vmem:[#allocation11 + $0x108] sm:$0xff]
    %v900 = vld [vmem:[#allocation11 + $0x110] sm:$0xff]
    %v901 = vld [vmem:[#allocation11 + $0x118] sm:$0xff]
    %v902 = vld [vmem:[#allocation11 + $0x120] sm:$0xff]
    %v903 = vld [vmem:[#allocation11 + $0x128] sm:$0xff]
    %v904 = vld [vmem:[#allocation11 + $0x130] sm:$0xff]
    %v905 = vld [vmem:[#allocation11 + $0x138] sm:$0xff]
    %v906 = vld [vmem:[#allocation11 + $0x140] sm:$0xff]
    %v907 = vld [vmem:[#allocation11 + $0x148] sm:$0xff]
    %v908 = vld [vmem:[#allocation11 + $0x150] sm:$0xff]
    %v909 = vld [vmem:[#allocation11 + $0x158] sm:$0xff]
    %v910 = vld [vmem:[#allocation11 + $0x160] sm:$0xff]
    %v911 = vld [vmem:[#allocation11 + $0x168] sm:$0xff]
    %v912 = vld [vmem:[#allocation11 + $0x170] sm:$0xff]
    %v913 = vld [vmem:[#allocation11 + $0x178] sm:$0xff]
    %v914 = vld [vmem:[#allocation11 + $0x180] sm:$0xff]
    %v915 = vld [vmem:[#allocation11 + $0x188] sm:$0xff]
    %v916 = vld [vmem:[#allocation11 + $0x190] sm:$0xff]
    %v917 = vld [vmem:[#allocation11 + $0x198] sm:$0xff]
    %v918 = vld [vmem:[#allocation11 + $0x1a0] sm:$0xff]
    %v919 = vld [vmem:[#allocation11 + $0x1a8] sm:$0xff]
    %v920 = vld [vmem:[#allocation11 + $0x1b0] sm:$0xff]
    %v921 = vld [vmem:[#allocation11 + $0x1b8] sm:$0xff]
    %v922 = vld [vmem:[#allocation11 + $0x1c0] sm:$0xff]
    %v923 = vld [vmem:[#allocation11 + $0x1c8] sm:$0xff]
    %v924 = vld [vmem:[#allocation11 + $0x1d0] sm:$0xff]
    %v925 = vld [vmem:[#allocation11 + $0x1d8] sm:$0xff]
    %v926 = vld [vmem:[#allocation11 + $0x1e0] sm:$0xff]
    %v927 = vld [vmem:[#allocation11 + $0x1e8] sm:$0xff]
    %v928 = vld [vmem:[#allocation11 + $0x1f0] sm:$0xff]
    %v929 = vld [vmem:[#allocation11 + $0x1f8] sm:$0xff]
    %v930 = vld [vmem:[#allocation11 + $0x200] sm:$0xff]
    %v931 = vld [vmem:[#allocation11 + $0x208] sm:$0xff]
    %v932 = vld [vmem:[#allocation11 + $0x210] sm:$0xff]
    %v933 = vld [vmem:[#allocation11 + $0x218] sm:$0xff]
    %v934 = vld [vmem:[#allocation11 + $0x220] sm:$0xff]
    %v935 = vld [vmem:[#allocation11 + $0x228] sm:$0xff]
    %v936 = vld [vmem:[#allocation11 + $0x230] sm:$0xff]
    %v937 = vld [vmem:[#allocation11 + $0x238] sm:$0xff]
    %v938 = vld [vmem:[#allocation11 + $0x240] sm:$0xff]
    %v939 = vld [vmem:[#allocation11 + $0x248] sm:$0xff]
    %v940 = vld [vmem:[#allocation11 + $0x250] sm:$0xff]
    %v941 = vld [vmem:[#allocation11 + $0x258] sm:$0xff]
    %v942 = vld [vmem:[#allocation11 + $0x260] sm:$0xff]
    %v943 = vld [vmem:[#allocation11 + $0x268] sm:$0xff]
    %v944 = vld [vmem:[#allocation11 + $0x270] sm:$0xff]
    %v945 = vld [vmem:[#allocation11 + $0x278] sm:$0xff]
    %v946 = vld [vmem:[#allocation11 + $0x280] sm:$0xff]
    %v947 = vld [vmem:[#allocation11 + $0x288] sm:$0xff]
    %v948 = vld [vmem:[#allocation11 + $0x290] sm:$0xff]
    %v949 = vld [vmem:[#allocation11 + $0x298] sm:$0xff]
    %v950 = vld [vmem:[#allocation11 + $0x2a0] sm:$0xff]
    %v951 = vld [vmem:[#allocation11 + $0x2a8] sm:$0xff]
    %v952 = vld [vmem:[#allocation11 + $0x2b0] sm:$0xff]
    %v953 = vld [vmem:[#allocation11 + $0x2b8] sm:$0xff]
    %v954 = vld [vmem:[#allocation11 + $0x2c0] sm:$0xff]
    %v955 = vld [vmem:[#allocation11 + $0x2c8] sm:$0xff]
    %v956 = vld [vmem:[#allocation11 + $0x2d0] sm:$0xff]
    %v957 = vld [vmem:[#allocation11 + $0x2d8] sm:$0xff]
    %v958 = vld [vmem:[#allocation11 + $0x2e0] sm:$0xff]
    %v959 = vld [vmem:[#allocation11 + $0x2e8] sm:$0xff]
    %v960 = vld [vmem:[#allocation11 + $0x2f0] sm:$0xff]
    %v961 = vld [vmem:[#allocation11 + $0x2f8] sm:$0xff]
    %962 = vmatprep.subr.mxu0 %v867
    %963 = vmatpush1.msra.mxu0 %v866
    %964 = vmatprep.subr.mxu0 %v873
    %965 = vmatpush1.msra.mxu0 %v872
    %966 = vmatprep.subr.mxu0 %v879
    %967 = vmatpush1.msra.mxu0 %v878
    %968 = vmatprep.subr.mxu0 %v885
    %969 = vmatpush1.msra.mxu0 %v884
    %970 = vmatprep.subr.mxu0 %v891
    %971 = vmatpush1.msra.mxu0 %v890
    %972 = vmatprep.subr.mxu0 %v897
    %973 = vmatpush1.msra.mxu0 %v896
    %974 = vmatprep.subr.mxu0 %v903
    %975 = vmatpush1.msra.mxu0 %v902
    %976 = vmatprep.subr.mxu0 %v909
    %977 = vmatpush1.msra.mxu0 %v908
    %978 = vmatprep.subr.mxu0 %v915
    %979 = vmatpush1.msra.mxu0 %v914
    %980 = vmatprep.subr.mxu0 %v921
    %981 = vmatpush1.msra.mxu0 %v920
    %982 = vmatprep.subr.mxu0 %v927
    %983 = vmatpush1.msra.mxu0 %v926
    %984 = vmatprep.subr.mxu0 %v933
    %985 = vmatpush1.msra.mxu0 %v932
    %986 = vmatprep.subr.mxu0 %v939
    %987 = vmatpush1.msra.mxu0 %v938
    %988 = vmatprep.subr.mxu0 %v945
    %989 = vmatpush1.msra.mxu0 %v944
    %990 = vmatprep.subr.mxu0 %v951
    %991 = vmatpush1.msra.mxu0 %v950
    %992 = vmatprep.subr.mxu0 %v957
    %993 = vmatpush1.msra.mxu0 %v956
    %994 = vmatprep.subr.mxu0 0.0
    %995 = vmatpush1.msra.mxu0 0.0
    %996 = vmatprep.subr.mxu0 0.0
    %997 = vmatpush1.msra.mxu0 0.0
    %998 = vmatprep.subr.mxu0 0.0
    %999 = vmatpush1.msra.mxu0 0.0
    %1000 = vmatprep.subr.mxu0 0.0
    %1001 = vmatpush1.msra.mxu0 0.0
    %1002 = vmatprep.subr.mxu0 0.0
    %1003 = vmatpush1.msra.mxu0 0.0
    %1004 = vmatprep.subr.mxu0 0.0
    %1005 = vmatpush1.msra.mxu0 0.0
    %1006 = vmatprep.subr.mxu0 0.0
    %1007 = vmatpush1.msra.mxu0 0.0
    %1008 = vmatprep.subr.mxu0 0.0
    %1009 = vmatpush1.msra.mxu0 0.0
    %1010 = vmatprep.subr.mxu0 0.0
    %1011 = vmatpush1.msra.mxu0 0.0
    %1012 = vmatprep.subr.mxu0 0.0
    %1013 = vmatpush1.msra.mxu0 0.0
    %1014 = vmatprep.subr.mxu0 0.0
    %1015 = vmatpush1.msra.mxu0 0.0
    %1016 = vmatprep.subr.mxu0 0.0
    %1017 = vmatpush1.msra.mxu0 0.0
    %1018 = vmatprep.subr.mxu0 0.0
    %1019 = vmatpush1.msra.mxu0 0.0
    %1020 = vmatprep.subr.mxu0 0.0
    %1021 = vmatpush1.msra.mxu0 0.0
    %1022 = vmatprep.subr.mxu0 0.0
    %1023 = vmatpush1.msra.mxu0 0.0
    %1024 = vmatprep.subr.mxu0 0.0
    %1025 = vmatpush1.msra.mxu0 0.0
    %1026 = vmatprep.mubr.f32.mxu0 0.0
    %1027 = vmatmul.mubr.f32.gmra.mrb[0].mxu0 %v850
    %v1028 = vpop.f32.mrb[0].mxu0
    %v1029 = vadd.f32 0.0, %v1028
    %v1030 = vpop.f32.mrb[0].mxu0
    %v1031 = vadd.f32 0.0, %v1030
    %1032 = vmatprep.mubr.f32.mxu0 0.0
    %1033 = vmatmul.mubr.f32.gmra.mrb[0].mxu0 %v851
    %v1034 = vpop.f32.mrb[0].mxu0
    %v1035 = vadd.f32 0.0, %v1034
    %v1036 = vpop.f32.mrb[0].mxu0
    %v1037 = vadd.f32 0.0, %v1036
    %1038 = vmatprep.mubr.f32.mxu0 0.0
    %1039 = vmatmul.mubr.f32.gmra.mrb[0].mxu0 %v852
    %v1040 = vpop.f32.mrb[0].mxu0
    %v1041 = vadd.f32 0.0, %v1040
    %v1042 = vpop.f32.mrb[0].mxu0
    %v1043 = vadd.f32 0.0, %v1042
    %1044 = vmatprep.mubr.f32.mxu0 0.0
    %1045 = vmatmul.mubr.f32.gmra.mrb[0].mxu0 %v853
    %v1046 = vpop.f32.mrb[0].mxu0
    %v1047 = vadd.f32 0.0, %v1046
    %v1048 = vpop.f32.mrb[0].mxu0
    %v1049 = vadd.f32 0.0, %v1048
    %1050 = vmatprep.mubr.f32.mxu0 0.0
    %1051 = vmatmul.mubr.f32.gmra.mrb[0].mxu0 %v854
    %v1052 = vpop.f32.mrb[0].mxu0
    %v1053 = vadd.f32 0.0, %v1052
    %v1054 = vpop.f32.mrb[0].mxu0
    %v1055 = vadd.f32 0.0, %v1054
    %1056 = vmatprep.mubr.f32.mxu0 0.0
    %1057 = vmatmul.mubr.f32.gmra.mrb[0].mxu0 %v855
    %v1058 = vpop.f32.mrb[0].mxu0
    %v1059 = vadd.f32 0.0, %v1058
    %v1060 = vpop.f32.mrb[0].mxu0
    %v1061 = vadd.f32 0.0, %v1060
    %1062 = vmatprep.mubr.f32.mxu0 0.0
    %1063 = vmatmul.mubr.f32.gmra.mrb[0].mxu0 %v856
    %v1064 = vpop.f32.mrb[0].mxu0
    %v1065 = vadd.f32 0.0, %v1064
    %v1066 = vpop.f32.mrb[0].mxu0
    %v1067 = vadd.f32 0.0, %v1066
    %1068 = vmatprep.mubr.f32.mxu0 0.0
    %1069 = vmatmul.mubr.f32.gmra.mrb[0].mxu0 %v857
    %v1070 = vpop.f32.mrb[0].mxu0
    %v1071 = vadd.f32 0.0, %v1070
    %v1072 = vpop.f32.mrb[0].mxu0
    %v1073 = vadd.f32 0.0, %v1072
    %1074 = vmatprep.mubr.f32.mxu0 0.0
    %1075 = vmatmul.mubr.f32.gmra.mrb[0].mxu0 %v858
    %v1076 = vpop.f32.mrb[0].mxu0
    %v1077 = vadd.f32 0.0, %v1076
    %v1078 = vpop.f32.mrb[0].mxu0
    %v1079 = vadd.f32 0.0, %v1078
    %1080 = vmatprep.mubr.f32.mxu0 0.0
    %1081 = vmatmul.mubr.f32.gmra.mrb[0].mxu0 %v859
    %v1082 = vpop.f32.mrb[0].mxu0
    %v1083 = vadd.f32 0.0, %v1082
    %v1084 = vpop.f32.mrb[0].mxu0
    %v1085 = vadd.f32 0.0, %v1084
    %1086 = vmatprep.mubr.f32.mxu0 0.0
    %1087 = vmatmul.mubr.f32.gmra.mrb[0].mxu0 %v860
    %v1088 = vpop.f32.mrb[0].mxu0
    %v1089 = vadd.f32 0.0, %v1088
    %v1090 = vpop.f32.mrb[0].mxu0
    %v1091 = vadd.f32 0.0, %v1090
    %1092 = vmatprep.mubr.f32.mxu0 0.0
    %1093 = vmatmul.mubr.f32.gmra.mrb[0].mxu0 %v861
    %v1094 = vpop.f32.mrb[0].mxu0
    %v1095 = vadd.f32 0.0, %v1094
    %v1096 = vpop.f32.mrb[0].mxu0
    %v1097 = vadd.f32 0.0, %v1096
    %1098 = vmatprep.mubr.f32.mxu0 0.0
    %1099 = vmatmul.mubr.f32.gmra.mrb[0].mxu0 %v862
    %v1100 = vpop.f32.mrb[0].mxu0
    %v1101 = vadd.f32 0.0, %v1100
    %v1102 = vpop.f32.mrb[0].mxu0
    %v1103 = vadd.f32 0.0, %v1102
    %1104 = vmatprep.mubr.f32.mxu0 0.0
    %1105 = vmatmul.mubr.f32.gmra.mrb[0].mxu0 %v863
    %v1106 = vpop.f32.mrb[0].mxu0
    %v1107 = vadd.f32 0.0, %v1106
    %v1108 = vpop.f32.mrb[0].mxu0
    %v1109 = vadd.f32 0.0, %v1108
    %1110 = vmatprep.mubr.f32.mxu0 0.0
    %1111 = vmatmul.mubr.f32.gmra.mrb[0].mxu0 %v864
    %v1112 = vpop.f32.mrb[0].mxu0
    %v1113 = vadd.f32 0.0, %v1112
    %v1114 = vpop.f32.mrb[0].mxu0
    %v1115 = vadd.f32 0.0, %v1114
    %1116 = vmatprep.mubr.f32.mxu0 0.0
    %1117 = vmatmul.mubr.f32.gmra.mrb[0].mxu0 %v865
    %v1118 = vpop.f32.mrb[0].mxu0
    %v1119 = vadd.f32 0.0, %v1118
    %v1120 = vpop.f32.mrb[0].mxu0
    %v1121 = vadd.f32 0.0, %v1120
    %1122 = vdwg.mxu0
    %1123 = vmatprep.subr.mxu0 %v869
    %1124 = vmatpush1.msra.mxu0 %v868
    %1125 = vmatprep.subr.mxu0 %v875
    %1126 = vmatpush1.msra.mxu0 %v874
    %1127 = vmatprep.subr.mxu0 %v881
    %1128 = vmatpush1.msra.mxu0 %v880
    %1129 = vmatprep.subr.mxu0 %v887
    %1130 = vmatpush1.msra.mxu0 %v886
    %1131 = vmatprep.subr.mxu0 %v893
    %1132 = vmatpush1.msra.mxu0 %v892
    %1133 = vmatprep.subr.mxu0 %v899
    %1134 = vmatpush1.msra.mxu0 %v898
    %1135 = vmatprep.subr.mxu0 %v905
    %1136 = vmatpush1.msra.mxu0 %v904
    %1137 = vmatprep.subr.mxu0 %v911
    %1138 = vmatpush1.msra.mxu0 %v910
    %1139 = vmatprep.subr.mxu0 %v917
    %1140 = vmatpush1.msra.mxu0 %v916
    %1141 = vmatprep.subr.mxu0 %v923
    %1142 = vmatpush1.msra.mxu0 %v922
    %1143 = vmatprep.subr.mxu0 %v929
    %1144 = vmatpush1.msra.mxu0 %v928
    %1145 = vmatprep.subr.mxu0 %v935
    %1146 = vmatpush1.msra.mxu0 %v934
    %1147 = vmatprep.subr.mxu0 %v941
    %1148 = vmatpush1.msra.mxu0 %v940
    %1149 = vmatprep.subr.mxu0 %v947
    %1150 = vmatpush1.msra.mxu0 %v946
    %1151 = vmatprep.subr.mxu0 %v953
    %1152 = vmatpush1.msra.mxu0 %v952
    %1153 = vmatprep.subr.mxu0 %v959
    %1154 = vmatpush1.msra.mxu0 %v958
    %1155 = vmatprep.subr.mxu0 0.0
    %1156 = vmatpush1.msra.mxu0 0.0
    %1157 = vmatprep.subr.mxu0 0.0
    %1158 = vmatpush1.msra.mxu0 0.0
    %1159 = vmatprep.subr.mxu0 0.0
    %1160 = vmatpush1.msra.mxu0 0.0
    %1161 = vmatprep.subr.mxu0 0.0
    %1162 = vmatpush1.msra.mxu0 0.0
    %1163 = vmatprep.subr.mxu0 0.0
    %1164 = vmatpush1.msra.mxu0 0.0
    %1165 = vmatprep.subr.mxu0 0.0
    %1166 = vmatpush1.msra.mxu0 0.0
    %1167 = vmatprep.subr.mxu0 0.0
    %1168 = vmatpush1.msra.mxu0 0.0
    %1169 = vmatprep.subr.mxu0 0.0
    %1170 = vmatpush1.msra.mxu0 0.0
    %1171 = vmatprep.subr.mxu0 0.0
    %1172 = vmatpush1.msra.mxu0 0.0
    %1173 = vmatprep.subr.mxu0 0.0
    %1174 = vmatpush1.msra.mxu0 0.0
    %1175 = vmatprep.subr.mxu0 0.0
    %1176 = vmatpush1.msra.mxu0 0.0
    %1177 = vmatprep.subr.mxu0 0.0
    %1178 = vmatpush1.msra.mxu0 0.0
    %1179 = vmatprep.subr.mxu0 0.0
    %1180 = vmatpush1.msra.mxu0 0.0
    %1181 = vmatprep.subr.mxu0 0.0
    %1182 = vmatpush1.msra.mxu0 0.0
    %1183 = vmatprep.subr.mxu0 0.0
    %1184 = vmatpush1.msra.mxu0 0.0
    %1185 = vmatprep.subr.mxu0 0.0
    %1186 = vmatpush1.msra.mxu0 0.0
    %1187 = vmatprep.mubr.f32.mxu0 0.0
    %1188 = vmatmul.mubr.f32.gmra.mrb[0].mxu0 %v850
    %v1189 = vpop.f32.mrb[0].mxu0
    %v1190 = vadd.f32 0.0, %v1189
    %v1191 = vpop.f32.mrb[0].mxu0
    %v1192 = vadd.f32 0.0, %v1191
    %1193 = vmatprep.mubr.f32.mxu0 0.0
    %1194 = vmatmul.mubr.f32.gmra.mrb[0].mxu0 %v851
    %v1195 = vpop.f32.mrb[0].mxu0
    %v1196 = vadd.f32 0.0, %v1195
    %v1197 = vpop.f32.mrb[0].mxu0
    %v1198 = vadd.f32 0.0, %v1197
    %1199 = vmatprep.mubr.f32.mxu0 0.0
    %1200 = vmatmul.mubr.f32.gmra.mrb[0].mxu0 %v852
    %v1201 = vpop.f32.mrb[0].mxu0
    %v1202 = vadd.f32 0.0, %v1201
    %v1203 = vpop.f32.mrb[0].mxu0
    %v1204 = vadd.f32 0.0, %v1203
    %1205 = vmatprep.mubr.f32.mxu0 0.0
    %1206 = vmatmul.mubr.f32.gmra.mrb[0].mxu0 %v853
    %v1207 = vpop.f32.mrb[0].mxu0
    %v1208 = vadd.f32 0.0, %v1207
    %v1209 = vpop.f32.mrb[0].mxu0
    %v1210 = vadd.f32 0.0, %v1209
    %1211 = vmatprep.mubr.f32.mxu0 0.0
    %1212 = vmatmul.mubr.f32.gmra.mrb[0].mxu0 %v854
    %v1213 = vpop.f32.mrb[0].mxu0
    %v1214 = vadd.f32 0.0, %v1213
    %v1215 = vpop.f32.mrb[0].mxu0
    %v1216 = vadd.f32 0.0, %v1215
    %1217 = vmatprep.mubr.f32.mxu0 0.0
    %1218 = vmatmul.mubr.f32.gmra.mrb[0].mxu0 %v855
    %v1219 = vpop.f32.mrb[0].mxu0
    %v1220 = vadd.f32 0.0, %v1219
    %v1221 = vpop.f32.mrb[0].mxu0
    %v1222 = vadd.f32 0.0, %v1221
    %1223 = vmatprep.mubr.f32.mxu0 0.0
    %1224 = vmatmul.mubr.f32.gmra.mrb[0].mxu0 %v856
    %v1225 = vpop.f32.mrb[0].mxu0
    %v1226 = vadd.f32 0.0, %v1225
    %v1227 = vpop.f32.mrb[0].mxu0
    %v1228 = vadd.f32 0.0, %v1227
    %1229 = vmatprep.mubr.f32.mxu0 0.0
    %1230 = vmatmul.mubr.f32.gmra.mrb[0].mxu0 %v857
    %v1231 = vpop.f32.mrb[0].mxu0
    %v1232 = vadd.f32 0.0, %v1231
    %v1233 = vpop.f32.mrb[0].mxu0
    %v1234 = vadd.f32 0.0, %v1233
    %1235 = vmatprep.mubr.f32.mxu0 0.0
    %1236 = vmatmul.mubr.f32.gmra.mrb[0].mxu0 %v858
    %v1237 = vpop.f32.mrb[0].mxu0
    %v1238 = vadd.f32 0.0, %v1237
    %v1239 = vpop.f32.mrb[0].mxu0
    %v1240 = vadd.f32 0.0, %v1239
    %1241 = vmatprep.mubr.f32.mxu0 0.0
    %1242 = vmatmul.mubr.f32.gmra.mrb[0].mxu0 %v859
    %v1243 = vpop.f32.mrb[0].mxu0
    %v1244 = vadd.f32 0.0, %v1243
    %v1245 = vpop.f32.mrb[0].mxu0
    %v1246 = vadd.f32 0.0, %v1245
    %1247 = vmatprep.mubr.f32.mxu0 0.0
    %1248 = vmatmul.mubr.f32.gmra.mrb[0].mxu0 %v860
    %v1249 = vpop.f32.mrb[0].mxu0
    %v1250 = vadd.f32 0.0, %v1249
    %v1251 = vpop.f32.mrb[0].mxu0
    %v1252 = vadd.f32 0.0, %v1251
    %1253 = vmatprep.mubr.f32.mxu0 0.0
    %1254 = vmatmul.mubr.f32.gmra.mrb[0].mxu0 %v861
    %v1255 = vpop.f32.mrb[0].mxu0
    %v1256 = vadd.f32 0.0, %v1255
    %v1257 = vpop.f32.mrb[0].mxu0
    %v1258 = vadd.f32 0.0, %v1257
    %1259 = vmatprep.mubr.f32.mxu0 0.0
    %1260 = vmatmul.mubr.f32.gmra.mrb[0].mxu0 %v862
    %v1261 = vpop.f32.mrb[0].mxu0
    %v1262 = vadd.f32 0.0, %v1261
    %v1263 = vpop.f32.mrb[0].mxu0
    %v1264 = vadd.f32 0.0, %v1263
    %1265 = vmatprep.mubr.f32.mxu0 0.0
    %1266 = vmatmul.mubr.f32.gmra.mrb[0].mxu0 %v863
    %v1267 = vpop.f32.mrb[0].mxu0
    %v1268 = vadd.f32 0.0, %v1267
    %v1269 = vpop.f32.mrb[0].mxu0
    %v1270 = vadd.f32 0.0, %v1269
    %1271 = vmatprep.mubr.f32.mxu0 0.0
    %1272 = vmatmul.mubr.f32.gmra.mrb[0].mxu0 %v864
    %v1273 = vpop.f32.mrb[0].mxu0
    %v1274 = vadd.f32 0.0, %v1273
    %v1275 = vpop.f32.mrb[0].mxu0
    %v1276 = vadd.f32 0.0, %v1275
    %1277 = vmatprep.mubr.f32.mxu0 0.0
    %1278 = vmatmul.mubr.f32.gmra.mrb[0].mxu0 %v865
    %v1279 = vpop.f32.mrb[0].mxu0
    %v1280 = vadd.f32 0.0, %v1279
    %v1281 = vpop.f32.mrb[0].mxu0
    %v1282 = vadd.f32 0.0, %v1281
    %1283 = vdwg.mxu0
    %1284 = vmatprep.subr.mxu0 %v871
    %1285 = vmatpush1.msra.mxu0 %v870
    %1286 = vmatprep.subr.mxu0 %v877
    %1287 = vmatpush1.msra.mxu0 %v876
    %1288 = vmatprep.subr.mxu0 %v883
    %1289 = vmatpush1.msra.mxu0 %v882
    %1290 = vmatprep.subr.mxu0 %v889
    %1291 = vmatpush1.msra.mxu0 %v888
    %1292 = vmatprep.subr.mxu0 %v895
    %1293 = vmatpush1.msra.mxu0 %v894
    %1294 = vmatprep.subr.mxu0 %v901
    %1295 = vmatpush1.msra.mxu0 %v900
    %1296 = vmatprep.subr.mxu0 %v907
    %1297 = vmatpush1.msra.mxu0 %v906
    %1298 = vmatprep.subr.mxu0 %v913
    %1299 = vmatpush1.msra.mxu0 %v912
    %1300 = vmatprep.subr.mxu0 %v919
    %1301 = vmatpush1.msra.mxu0 %v918
    %1302 = vmatprep.subr.mxu0 %v925
    %1303 = vmatpush1.msra.mxu0 %v924
    %1304 = vmatprep.subr.mxu0 %v931
    %1305 = vmatpush1.msra.mxu0 %v930
    %1306 = vmatprep.subr.mxu0 %v937
    %1307 = vmatpush1.msra.mxu0 %v936
    %1308 = vmatprep.subr.mxu0 %v943
    %1309 = vmatpush1.msra.mxu0 %v942
    %1310 = vmatprep.subr.mxu0 %v949
    %1311 = vmatpush1.msra.mxu0 %v948
    %1312 = vmatprep.subr.mxu0 %v955
    %1313 = vmatpush1.msra.mxu0 %v954
    %1314 = vmatprep.subr.mxu0 %v961
    %1315 = vmatpush1.msra.mxu0 %v960
    %1316 = vmatprep.subr.mxu0 0.0
    %1317 = vmatpush1.msra.mxu0 0.0
    %1318 = vmatprep.subr.mxu0 0.0
    %1319 = vmatpush1.msra.mxu0 0.0
    %1320 = vmatprep.subr.mxu0 0.0
    %1321 = vmatpush1.msra.mxu0 0.0
    %1322 = vmatprep.subr.mxu0 0.0
    %1323 = vmatpush1.msra.mxu0 0.0
    %1324 = vmatprep.subr.mxu0 0.0
    %1325 = vmatpush1.msra.mxu0 0.0
    %1326 = vmatprep.subr.mxu0 0.0
    %1327 = vmatpush1.msra.mxu0 0.0
    %1328 = vmatprep.subr.mxu0 0.0
    %1329 = vmatpush1.msra.mxu0 0.0
    %1330 = vmatprep.subr.mxu0 0.0
    %1331 = vmatpush1.msra.mxu0 0.0
    %1332 = vmatprep.subr.mxu0 0.0
    %1333 = vmatpush1.msra.mxu0 0.0
    %1334 = vmatprep.subr.mxu0 0.0
    %1335 = vmatpush1.msra.mxu0 0.0
    %1336 = vmatprep.subr.mxu0 0.0
    %1337 = vmatpush1.msra.mxu0 0.0
    %1338 = vmatprep.subr.mxu0 0.0
    %1339 = vmatpush1.msra.mxu0 0.0
    %1340 = vmatprep.subr.mxu0 0.0
    %1341 = vmatpush1.msra.mxu0 0.0
    %1342 = vmatprep.subr.mxu0 0.0
    %1343 = vmatpush1.msra.mxu0 0.0
    %1344 = vmatprep.subr.mxu0 0.0
    %1345 = vmatpush1.msra.mxu0 0.0
    %1346 = vmatprep.subr.mxu0 0.0
    %1347 = vmatpush1.msra.mxu0 0.0
    %1348 = vmatprep.mubr.f32.mxu0 0.0
    %1349 = vmatmul.mubr.f32.gmra.mrb[0].mxu0 %v850
    %v1350 = vpop.f32.mrb[0].mxu0
    %v1351 = vadd.f32 0.0, %v1350
    %v1352 = vpop.f32.mrb[0].mxu0
    %v1353 = vadd.f32 0.0, %v1352
    %1354 = vmatprep.mubr.f32.mxu0 0.0
    %1355 = vmatmul.mubr.f32.gmra.mrb[0].mxu0 %v851
    %v1356 = vpop.f32.mrb[0].mxu0
    %v1357 = vadd.f32 0.0, %v1356
    %v1358 = vpop.f32.mrb[0].mxu0
    %v1359 = vadd.f32 0.0, %v1358
    %1360 = vmatprep.mubr.f32.mxu0 0.0
    %1361 = vmatmul.mubr.f32.gmra.mrb[0].mxu0 %v852
    %v1362 = vpop.f32.mrb[0].mxu0
    %v1363 = vadd.f32 0.0, %v1362
    %v1364 = vpop.f32.mrb[0].mxu0
    %v1365 = vadd.f32 0.0, %v1364
    %1366 = vmatprep.mubr.f32.mxu0 0.0
    %1367 = vmatmul.mubr.f32.gmra.mrb[0].mxu0 %v853
    %v1368 = vpop.f32.mrb[0].mxu0
    %v1369 = vadd.f32 0.0, %v1368
    %v1370 = vpop.f32.mrb[0].mxu0
    %v1371 = vadd.f32 0.0, %v1370
    %1372 = vmatprep.mubr.f32.mxu0 0.0
    %1373 = vmatmul.mubr.f32.gmra.mrb[0].mxu0 %v854
    %v1374 = vpop.f32.mrb[0].mxu0
    %v1375 = vadd.f32 0.0, %v1374
    %v1376 = vpop.f32.mrb[0].mxu0
    %v1377 = vadd.f32 0.0, %v1376
    %1378 = vmatprep.mubr.f32.mxu0 0.0
    %1379 = vmatmul.mubr.f32.gmra.mrb[0].mxu0 %v855
    %v1380 = vpop.f32.mrb[0].mxu0
    %v1381 = vadd.f32 0.0, %v1380
    %v1382 = vpop.f32.mrb[0].mxu0
    %v1383 = vadd.f32 0.0, %v1382
    %1384 = vmatprep.mubr.f32.mxu0 0.0
    %1385 = vmatmul.mubr.f32.gmra.mrb[0].mxu0 %v856
    %v1386 = vpop.f32.mrb[0].mxu0
    %v1387 = vadd.f32 0.0, %v1386
    %v1388 = vpop.f32.mrb[0].mxu0
    %v1389 = vadd.f32 0.0, %v1388
    %1390 = vmatprep.mubr.f32.mxu0 0.0
    %1391 = vmatmul.mubr.f32.gmra.mrb[0].mxu0 %v857
    %v1392 = vpop.f32.mrb[0].mxu0
    %v1393 = vadd.f32 0.0, %v1392
    %v1394 = vpop.f32.mrb[0].mxu0
    %v1395 = vadd.f32 0.0, %v1394
    %1396 = vmatprep.mubr.f32.mxu0 0.0
    %1397 = vmatmul.mubr.f32.gmra.mrb[0].mxu0 %v858
    %v1398 = vpop.f32.mrb[0].mxu0
    %v1399 = vadd.f32 0.0, %v1398
    %v1400 = vpop.f32.mrb[0].mxu0
    %v1401 = vadd.f32 0.0, %v1400
    %1402 = vmatprep.mubr.f32.mxu0 0.0
    %1403 = vmatmul.mubr.f32.gmra.mrb[0].mxu0 %v859
    %v1404 = vpop.f32.mrb[0].mxu0
    %v1405 = vadd.f32 0.0, %v1404
    %v1406 = vpop.f32.mrb[0].mxu0
    %v1407 = vadd.f32 0.0, %v1406
    %1408 = vmatprep.mubr.f32.mxu0 0.0
    %1409 = vmatmul.mubr.f32.gmra.mrb[0].mxu0 %v860
    %v1410 = vpop.f32.mrb[0].mxu0
    %v1411 = vadd.f32 0.0, %v1410
    %v1412 = vpop.f32.mrb[0].mxu0
    %v1413 = vadd.f32 0.0, %v1412
    %1414 = vmatprep.mubr.f32.mxu0 0.0
    %1415 = vmatmul.mubr.f32.gmra.mrb[0].mxu0 %v861
    %v1416 = vpop.f32.mrb[0].mxu0
    %v1417 = vadd.f32 0.0, %v1416
    %v1418 = vpop.f32.mrb[0].mxu0
    %v1419 = vadd.f32 0.0, %v1418
    %1420 = vmatprep.mubr.f32.mxu0 0.0
    %1421 = vmatmul.mubr.f32.gmra.mrb[0].mxu0 %v862
    %v1422 = vpop.f32.mrb[0].mxu0
    %v1423 = vadd.f32 0.0, %v1422
    %v1424 = vpop.f32.mrb[0].mxu0
    %v1425 = vadd.f32 0.0, %v1424
    %1426 = vmatprep.mubr.f32.mxu0 0.0
    %1427 = vmatmul.mubr.f32.gmra.mrb[0].mxu0 %v863
    %v1428 = vpop.f32.mrb[0].mxu0
    %v1429 = vadd.f32 0.0, %v1428
    %v1430 = vpop.f32.mrb[0].mxu0
    %v1431 = vadd.f32 0.0, %v1430
    %1432 = vmatprep.mubr.f32.mxu0 0.0
    %1433 = vmatmul.mubr.f32.gmra.mrb[0].mxu0 %v864
    %v1434 = vpop.f32.mrb[0].mxu0
    %v1435 = vadd.f32 0.0, %v1434
    %v1436 = vpop.f32.mrb[0].mxu0
    %v1437 = vadd.f32 0.0, %v1436
    %1438 = vmatprep.mubr.f32.mxu0 0.0
    %1439 = vmatmul.mubr.f32.gmra.mrb[0].mxu0 %v865
    %v1440 = vpop.f32.mrb[0].mxu0
    %v1441 = vadd.f32 0.0, %v1440
    %v1442 = vpop.f32.mrb[0].mxu0
    %v1443 = vadd.f32 0.0, %v1442
    %1444 = vdwg.mxu0
    %v1445 = vmul.f32 %v593, %v1029
    %v1446 = vmul.f32 %v594, %v1031
    %v1447 = vmul.f32 %v595, %v1035
    %v1448 = vmul.f32 %v596, %v1037
    %v1449 = vmul.f32 %v597, %v1041
    %v1450 = vmul.f32 %v598, %v1043
    %v1451 = vmul.f32 %v599, %v1047
    %v1452 = vmul.f32 %v600, %v1049
    %v1453 = vmul.f32 %v601, %v1053
    %v1454 = vmul.f32 %v602, %v1055
    %v1455 = vmul.f32 %v603, %v1059
    %v1456 = vmul.f32 %v604, %v1061
    %v1457 = vmul.f32 %v605, %v1065
    %v1458 = vmul.f32 %v606, %v1067
    %v1459 = vmul.f32 %v607, %v1071
    %v1460 = vmul.f32 %v608, %v1073
    %v1461 = vmul.f32 %v609, %v1077
    %v1462 = vmul.f32 %v610, %v1079
    %v1463 = vmul.f32 %v611, %v1083
    %v1464 = vmul.f32 %v612, %v1085
    %v1465 = vmul.f32 %v613, %v1089
    %v1466 = vmul.f32 %v614, %v1091
    %v1467 = vmul.f32 %v615, %v1095
    %v1468 = vmul.f32 %v616, %v1097
    %v1469 = vmul.f32 %v617, %v1101
    %v1470 = vmul.f32 %v618, %v1103
    %v1471 = vmul.f32 %v619, %v1107
    %v1472 = vmul.f32 %v620, %v1109
    %v1473 = vmul.f32 %v621, %v1113
    %v1474 = vmul.f32 %v622, %v1115
    %v1475 = vmul.f32 %v623, %v1119
    %v1476 = vmul.f32 %v624, %v1121
    %v1477 = vpack.c.bf16 %v1447, %v1445
    %v1478 = vpack.c.bf16 %v1448, %v1446
    %v1479 = vpack.c.bf16 %v1451, %v1449
    %v1480 = vpack.c.bf16 %v1452, %v1450
    %v1481 = vpack.c.bf16 %v1455, %v1453
    %v1482 = vpack.c.bf16 %v1456, %v1454
    %v1483 = vpack.c.bf16 %v1459, %v1457
    %v1484 = vpack.c.bf16 %v1460, %v1458
    %v1485 = vpack.c.bf16 %v1463, %v1461
    %v1486 = vpack.c.bf16 %v1464, %v1462
    %v1487 = vpack.c.bf16 %v1467, %v1465
    %v1488 = vpack.c.bf16 %v1468, %v1466
    %v1489 = vpack.c.bf16 %v1471, %v1469
    %v1490 = vpack.c.bf16 %v1472, %v1470
    %v1491 = vpack.c.bf16 %v1475, %v1473
    %v1492 = vpack.c.bf16 %v1476, %v1474
    %v1493 = vmul.f32 %v593, %v1190
    %v1494 = vmul.f32 %v594, %v1192
    %v1495 = vmul.f32 %v595, %v1196
    %v1496 = vmul.f32 %v596, %v1198
    %v1497 = vmul.f32 %v597, %v1202
    %v1498 = vmul.f32 %v598, %v1204
    %v1499 = vmul.f32 %v599, %v1208
    %v1500 = vmul.f32 %v600, %v1210
    %v1501 = vmul.f32 %v601, %v1214
    %v1502 = vmul.f32 %v602, %v1216
    %v1503 = vmul.f32 %v603, %v1220
    %v1504 = vmul.f32 %v604, %v1222
    %v1505 = vmul.f32 %v605, %v1226
    %v1506 = vmul.f32 %v606, %v1228
    %v1507 = vmul.f32 %v607, %v1232
    %v1508 = vmul.f32 %v608, %v1234
    %v1509 = vmul.f32 %v609, %v1238
    %v1510 = vmul.f32 %v610, %v1240
    %v1511 = vmul.f32 %v611, %v1244
    %v1512 = vmul.f32 %v612, %v1246
    %v1513 = vmul.f32 %v613, %v1250
    %v1514 = vmul.f32 %v614, %v1252
    %v1515 = vmul.f32 %v615, %v1256
    %v1516 = vmul.f32 %v616, %v1258
    %v1517 = vmul.f32 %v617, %v1262
    %v1518 = vmul.f32 %v618, %v1264
    %v1519 = vmul.f32 %v619, %v1268
    %v1520 = vmul.f32 %v620, %v1270
    %v1521 = vmul.f32 %v621, %v1274
    %v1522 = vmul.f32 %v622, %v1276
    %v1523 = vmul.f32 %v623, %v1280
    %v1524 = vmul.f32 %v624, %v1282
    %v1525 = vpack.c.bf16 %v1495, %v1493
    %v1526 = vpack.c.bf16 %v1496, %v1494
    %v1527 = vpack.c.bf16 %v1499, %v1497
    %v1528 = vpack.c.bf16 %v1500, %v1498
    %v1529 = vpack.c.bf16 %v1503, %v1501
    %v1530 = vpack.c.bf16 %v1504, %v1502
    %v1531 = vpack.c.bf16 %v1507, %v1505
    %v1532 = vpack.c.bf16 %v1508, %v1506
    %v1533 = vpack.c.bf16 %v1511, %v1509
    %v1534 = vpack.c.bf16 %v1512, %v1510
    %v1535 = vpack.c.bf16 %v1515, %v1513
    %v1536 = vpack.c.bf16 %v1516, %v1514
    %v1537 = vpack.c.bf16 %v1519, %v1517
    %v1538 = vpack.c.bf16 %v1520, %v1518
    %v1539 = vpack.c.bf16 %v1523, %v1521
    %v1540 = vpack.c.bf16 %v1524, %v1522
    %v1541 = vmul.f32 %v593, %v1351
    %v1542 = vmul.f32 %v594, %v1353
    %v1543 = vmul.f32 %v595, %v1357
    %v1544 = vmul.f32 %v596, %v1359
    %v1545 = vmul.f32 %v597, %v1363
    %v1546 = vmul.f32 %v598, %v1365
    %v1547 = vmul.f32 %v599, %v1369
    %v1548 = vmul.f32 %v600, %v1371
    %v1549 = vmul.f32 %v601, %v1375
    %v1550 = vmul.f32 %v602, %v1377
    %v1551 = vmul.f32 %v603, %v1381
    %v1552 = vmul.f32 %v604, %v1383
    %v1553 = vmul.f32 %v605, %v1387
    %v1554 = vmul.f32 %v606, %v1389
    %v1555 = vmul.f32 %v607, %v1393
    %v1556 = vmul.f32 %v608, %v1395
    %v1557 = vmul.f32 %v609, %v1399
    %v1558 = vmul.f32 %v610, %v1401
    %v1559 = vmul.f32 %v611, %v1405
    %v1560 = vmul.f32 %v612, %v1407
    %v1561 = vmul.f32 %v613, %v1411
    %v1562 = vmul.f32 %v614, %v1413
    %v1563 = vmul.f32 %v615, %v1417
    %v1564 = vmul.f32 %v616, %v1419
    %v1565 = vmul.f32 %v617, %v1423
    %v1566 = vmul.f32 %v618, %v1425
    %v1567 = vmul.f32 %v619, %v1429
    %v1568 = vmul.f32 %v620, %v1431
    %v1569 = vmul.f32 %v621, %v1435
    %v1570 = vmul.f32 %v622, %v1437
    %v1571 = vmul.f32 %v623, %v1441
    %v1572 = vmul.f32 %v624, %v1443
    %v1573 = vpack.c.bf16 %v1543, %v1541
    %v1574 = vpack.c.bf16 %v1544, %v1542
    %v1575 = vpack.c.bf16 %v1547, %v1545
    %v1576 = vpack.c.bf16 %v1548, %v1546
    %v1577 = vpack.c.bf16 %v1551, %v1549
    %v1578 = vpack.c.bf16 %v1552, %v1550
    %v1579 = vpack.c.bf16 %v1555, %v1553
    %v1580 = vpack.c.bf16 %v1556, %v1554
    %v1581 = vpack.c.bf16 %v1559, %v1557
    %v1582 = vpack.c.bf16 %v1560, %v1558
    %v1583 = vpack.c.bf16 %v1563, %v1561
    %v1584 = vpack.c.bf16 %v1564, %v1562
    %v1585 = vpack.c.bf16 %v1567, %v1565
    %v1586 = vpack.c.bf16 %v1568, %v1566
    %v1587 = vpack.c.bf16 %v1571, %v1569
    %v1588 = vpack.c.bf16 %v1572, %v1570
    %v1589 = vld [vmem:[#allocation2] sm:$0xff]
    %v1590 = vld [vmem:[#allocation2 + $0x8] sm:$0xff]
    %v1591 = vld [vmem:[#allocation2 + $0x10] sm:$0xff]
    %v1595 = vunpack.c.l.b16 %v1589
    %v1596 = vunpack.c.h.b16 %v1589
    %v1597 = vunpack.c.l.b16 %v1590
    %v1598 = vunpack.c.h.b16 %v1590
    %v1599 = vunpack.c.l.b16 %v1591
    %v1600 = vunpack.c.h.b16 %v1591
    %v1601 = vpack.c.b16 %v1595, %v1595
    %v1602 = vpack.c.b16 %v1596, %v1596
    %v1603 = vpack.c.b16 %v1597, %v1597
    %v1604 = vpack.c.b16 %v1598, %v1598
    %v1605 = vpack.c.b16 %v1599, %v1599
    %v1606 = vpack.c.b16 %v1600, %v1600
    %1613 = vmatprep.subr.bf16.mxu0 %v1478
    %1614 = vmatpush1.bf16.xpose.msra.mxu0 %v1477
    %1615 = vmatprep.subr.bf16.mxu0 %v1480
    %1616 = vmatpush1.bf16.xpose.msra.mxu0 %v1479
    %1617 = vmatprep.subr.bf16.mxu0 %v1482
    %1618 = vmatpush1.bf16.xpose.msra.mxu0 %v1481
    %1619 = vmatprep.subr.bf16.mxu0 %v1484
    %1620 = vmatpush1.bf16.xpose.msra.mxu0 %v1483
    %1621 = vmatprep.subr.bf16.mxu0 %v1486
    %1622 = vmatpush1.bf16.xpose.msra.mxu0 %v1485
    %1623 = vmatprep.subr.bf16.mxu0 %v1488
    %1624 = vmatpush1.bf16.xpose.msra.mxu0 %v1487
    %1625 = vmatprep.subr.bf16.mxu0 %v1490
    %1626 = vmatpush1.bf16.xpose.msra.mxu0 %v1489
    %1627 = vmatprep.subr.bf16.mxu0 %v1492
    %1628 = vmatpush1.bf16.xpose.msra.mxu0 %v1491
    %1629 = vmatprep.subr.bf16.mxu0 0
    %1630 = vmatpush1.bf16.xpose.msra.mxu0 0
    %1631 = vmatprep.subr.bf16.mxu0 0
    %1632 = vmatpush1.bf16.xpose.msra.mxu0 0
    %1633 = vmatprep.subr.bf16.mxu0 0
    %1634 = vmatpush1.bf16.xpose.msra.mxu0 0
    %1635 = vmatprep.subr.bf16.mxu0 0
    %1636 = vmatpush1.bf16.xpose.msra.mxu0 0
    %1637 = vmatprep.subr.bf16.mxu0 0
    %1638 = vmatpush1.bf16.xpose.msra.mxu0 0
    %1639 = vmatprep.subr.bf16.mxu0 0
    %1640 = vmatpush1.bf16.xpose.msra.mxu0 0
    %1641 = vmatprep.subr.bf16.mxu0 0
    %1642 = vmatpush1.bf16.xpose.msra.mxu0 0
    %1643 = vmatprep.subr.bf16.mxu0 0
    %1644 = vmatpush1.bf16.xpose.msra.mxu0 0
    %1645 = vmatprep.mubr.bf16.mxu0 %v1602
    %1646 = vmatmul.mubr.bf16.gmra.mrb[0].mxu0 %v1601
    %v1647 = vpop.f32.mrb[0].mxu0
    %v1648 = vadd.f32 0.0, %v1647
    %v1649 = vpop.f32.mrb[0].mxu0
    %v1650 = vpop.f32.mrb[0].mxu0
    %v1651 = vpop.f32.mrb[0].mxu0
    %1652 = vdwg.mxu0
    %1653 = vmatprep.subr.bf16.mxu0 %v1526
    %1654 = vmatpush1.bf16.xpose.msra.mxu0 %v1525
    %1655 = vmatprep.subr.bf16.mxu0 %v1528
    %1656 = vmatpush1.bf16.xpose.msra.mxu0 %v1527
    %1657 = vmatprep.subr.bf16.mxu0 %v1530
    %1658 = vmatpush1.bf16.xpose.msra.mxu0 %v1529
    %1659 = vmatprep.subr.bf16.mxu0 %v1532
    %1660 = vmatpush1.bf16.xpose.msra.mxu0 %v1531
    %1661 = vmatprep.subr.bf16.mxu0 %v1534
    %1662 = vmatpush1.bf16.xpose.msra.mxu0 %v1533
    %1663 = vmatprep.subr.bf16.mxu0 %v1536
    %1664 = vmatpush1.bf16.xpose.msra.mxu0 %v1535
    %1665 = vmatprep.subr.bf16.mxu0 %v1538
    %1666 = vmatpush1.bf16.xpose.msra.mxu0 %v1537
    %1667 = vmatprep.subr.bf16.mxu0 %v1540
    %1668 = vmatpush1.bf16.xpose.msra.mxu0 %v1539
    %1669 = vmatprep.subr.bf16.mxu0 0
    %1670 = vmatpush1.bf16.xpose.msra.mxu0 0
    %1671 = vmatprep.subr.bf16.mxu0 0
    %1672 = vmatpush1.bf16.xpose.msra.mxu0 0
    %1673 = vmatprep.subr.bf16.mxu0 0
    %1674 = vmatpush1.bf16.xpose.msra.mxu0 0
    %1675 = vmatprep.subr.bf16.mxu0 0
    %1676 = vmatpush1.bf16.xpose.msra.mxu0 0
    %1677 = vmatprep.subr.bf16.mxu0 0
    %1678 = vmatpush1.bf16.xpose.msra.mxu0 0
    %1679 = vmatprep.subr.bf16.mxu0 0
    %1680 = vmatpush1.bf16.xpose.msra.mxu0 0
    %1681 = vmatprep.subr.bf16.mxu0 0
    %1682 = vmatpush1.bf16.xpose.msra.mxu0 0
    %1683 = vmatprep.subr.bf16.mxu0 0
    %1684 = vmatpush1.bf16.xpose.msra.mxu0 0
    %1685 = vmatprep.mubr.bf16.mxu0 %v1604
    %1686 = vmatmul.mubr.bf16.gmra.mrb[0].mxu0 %v1603
    %v1687 = vpop.f32.mrb[0].mxu0
    %v1688 = vadd.f32 %v1648, %v1687
    %v1689 = vpop.f32.mrb[0].mxu0
    %v1690 = vpop.f32.mrb[0].mxu0
    %v1691 = vpop.f32.mrb[0].mxu0
    %1692 = vdwg.mxu0
    %1693 = vmatprep.subr.bf16.mxu0 %v1574
    %1694 = vmatpush1.bf16.xpose.msra.mxu0 %v1573
    %1695 = vmatprep.subr.bf16.mxu0 %v1576
    %1696 = vmatpush1.bf16.xpose.msra.mxu0 %v1575
    %1697 = vmatprep.subr.bf16.mxu0 %v1578
    %1698 = vmatpush1.bf16.xpose.msra.mxu0 %v1577
    %1699 = vmatprep.subr.bf16.mxu0 %v1580
    %1700 = vmatpush1.bf16.xpose.msra.mxu0 %v1579
    %1701 = vmatprep.subr.bf16.mxu0 %v1582
    %1702 = vmatpush1.bf16.xpose.msra.mxu0 %v1581
    %1703 = vmatprep.subr.bf16.mxu0 %v1584
    %1704 = vmatpush1.bf16.xpose.msra.mxu0 %v1583
    %1705 = vmatprep.subr.bf16.mxu0 %v1586
    %1706 = vmatpush1.bf16.xpose.msra.mxu0 %v1585
    %1707 = vmatprep.subr.bf16.mxu0 %v1588
    %1708 = vmatpush1.bf16.xpose.msra.mxu0 %v1587
    %1709 = vmatprep.subr.bf16.mxu0 0
    %1710 = vmatpush1.bf16.xpose.msra.mxu0 0
    %1711 = vmatprep.subr.bf16.mxu0 0
    %1712 = vmatpush1.bf16.xpose.msra.mxu0 0
    %1713 = vmatprep.subr.bf16.mxu0 0
    %1714 = vmatpush1.bf16.xpose.msra.mxu0 0
    %1715 = vmatprep.subr.bf16.mxu0 0
    %1716 = vmatpush1.bf16.xpose.msra.mxu0 0
    %1717 = vmatprep.subr.bf16.mxu0 0
    %1718 = vmatpush1.bf16.xpose.msra.mxu0 0
    %1719 = vmatprep.subr.bf16.mxu0 0
    %1720 = vmatpush1.bf16.xpose.msra.mxu0 0
    %1721 = vmatprep.subr.bf16.mxu0 0
    %1722 = vmatpush1.bf16.xpose.msra.mxu0 0
    %1723 = vmatprep.subr.bf16.mxu0 0
    %1724 = vmatpush1.bf16.xpose.msra.mxu0 0
    %1725 = vmatprep.mubr.bf16.mxu0 %v1606
    %1726 = vmatmul.mubr.bf16.gmra.mrb[0].mxu0 %v1605
    %v1727 = vpop.f32.mrb[0].mxu0
    %v1728 = vadd.f32 %v1688, %v1727
    %v1729 = vpop.f32.mrb[0].mxu0
    %v1730 = vpop.f32.mrb[0].mxu0
    %v1731 = vpop.f32.mrb[0].mxu0
    %1732 = vdwg.mxu0
    %1733 = vst [vmem:[#allocation12] sm:$0xff] %v1728
    // Predicated region
    $region46: #{tpu_custom_call.1} parent=1 // pred_check
      _
    $region47: #{tpu_custom_call.1} parent=1 // pred_check_branch
      %1735 = sbr.rel (0) target = $region49
    $region48: #{tpu_custom_call.1} parent=1 // pred_region
      %s1737 = ssub.s32 128, 128
      %1738 = vsyncadd [#allocation5], %s1737
      %s1740 = sshll.u32 [#allocation12], 4
      %s1741 = int_to_ptr.vmem [resolvable:$true] %s1740
      %1743 = dma.vmem_to_hbm [thread:$0]  %s1741, 128, %s5, [#allocation5]
    $region49: #{tpu_custom_call.1} parent=1 // pred_fallthru
      _
    // Predicated region
    $region50: #{tpu_custom_call.1} parent=1 // pred_check
      _
    $region51: #{tpu_custom_call.1} parent=1 // pred_check_branch
      %1745 = sbr.rel (0) target = $region53
    $region52: #{tpu_custom_call.1} parent=1 // pred_region
      %1746 = dma.done [#allocation5], 128
    $region53: #{tpu_custom_call.1} parent=1 // pred_fallthru
      _
    %1747 = vsyncpa [#allocation4], 1
    %1748 = vsyncpa [#allocation7], 1
    %1749 = vsyncpa [#allocation10], 1
    %1750 = vsyncpa [#allocation5], 1

</llo_original>
